<compile_context>
chip_gen: v6e
topology: v6e:2x2x1
jax: 0.10.0
libtpu: 0.0.40
codegen_flags: <defaults>
</compile_context>

<pallas_src>
import functools
import numpy as np

import jax
import jax.numpy as jnp
from jax.experimental import pallas as pl
from jax.experimental.pallas import tpu as pltpu

EPS = 1e-6  # nn.LayerNorm(d_model, eps=1e-06)


def _layernorm(x, gamma, beta):
    # f32 VPU/EUP math (v5e has no bf16 VALU/EUP).
    mu = jnp.mean(x, axis=-1, keepdims=True)
    var = jnp.mean((x - mu) ** 2, axis=-1, keepdims=True)
    return (x - mu) * jax.lax.rsqrt(var + EPS) * gamma + beta


# ---------------------------------------------------------------------------
# Fused MHA kernel (one grid step = one batch element x one query-row tile):
#   QKV proj -> head-batched softmax(QK^T)V -> fc -> residual -> LayerNorm
# ---------------------------------------------------------------------------
def mha_kernel(q_ref, k_ref, v_ref,
               wq_ref, wk_ref, wv_ref, wo_ref,
               g_ref, b_ref,
               o_ref, *, n_head):
    Tq, D = q_ref.shape                     # (tq, D) query-row tile, D lane-dense
    Lk = k_ref.shape[0]
    dk = D // n_head
    scale = 1.0 / float(dk) ** 0.5          # applied in-kernel (no host-side fold)

    qx = q_ref[...]                         # f32 (Tq, D)
    residual = qx

    # ---- packed QKV projections: full-width (.,D)@(D,D) MXU matmuls, bf16 in /
    # f32 acc. k/v arrive bf16 from the caller (no in-kernel pack pass).
    qp = jnp.dot(qx.astype(jnp.bfloat16), wq_ref[...],
                 preferred_element_type=jnp.float32) * scale        # (Tq, D)
    kp = jnp.dot(k_ref[...], wk_ref[...],
                 preferred_element_type=jnp.float32)                # (Lk, D)
    vp = jnp.dot(v_ref[...], wv_ref[...],
                 preferred_element_type=jnp.float32)                # (Lk, D)

    # ---- one bulk relayout to head-major (H, rows, dk); replaces the per-head
    # 32-lane slicing loop. The transpose only moves non-minor dims.
    qh = jnp.transpose(qp.reshape(Tq, n_head, dk), (1, 0, 2)).astype(jnp.bfloat16)
    kh = jnp.transpose(kp.reshape(Lk, n_head, dk), (1, 0, 2)).astype(jnp.bfloat16)
    vh = jnp.transpose(vp.reshape(Lk, n_head, dk), (1, 0, 2)).astype(jnp.bfloat16)

    # ---- head-batched attention (single batched contraction per stage).
    logits = jnp.einsum('hqd,hkd->hqk', qh, kh,
                        preferred_element_type=jnp.float32)         # (H, Tq, Lk)
    logits = logits - jnp.max(logits, axis=-1, keepdims=True)
    p = jnp.exp(logits)                                             # f32 (EUP/VPU)
    # Deferred softmax normalization: reciprocal on the EUP slot, applied to ctx
    # (O(Tq*D) multiplies) instead of to p (O(Tq*Lk*H)).
    inv = pl.reciprocal(jnp.sum(p, axis=-1, keepdims=True), approx=True)  # (H,Tq,1)

    ctx = jnp.einsum('hqk,hkd->hqd', p.astype(jnp.bfloat16), vh,
                     preferred_element_type=jnp.float32)            # (H, Tq, dk)
    ctx = ctx * inv
    # Merge heads back to concat-heads lane layout: (Tq, H*dk) == (Tq, D).
    ctx2 = jnp.transpose(ctx, (1, 0, 2)).reshape(Tq, D)

    # ---- single K=D output projection + residual + LayerNorm, one full-width
    # lane-dense store.
    out = jnp.dot(ctx2.astype(jnp.bfloat16), wo_ref[...],
                  preferred_element_type=jnp.float32)               # (Tq, D)
    out = out + residual
    o_ref[...] = _layernorm(out, g_ref[...], b_ref[...]).astype(o_ref.dtype)


def multi_head_attention(q, k, v, params, n_head):
    """q: (B, Lq, D) f32, k/v: (B, Lk, D). Returns (B, Lq, D) f32."""
    B, Lq, D = q.shape
    Lk = k.shape[1]
    dk = D // n_head

    # K/V in bf16 halves their HBM->VMEM DMA bytes; q stays f32 (residual / LN).
    k_bf = k.astype(jnp.bfloat16)
    v_bf = v.astype(jnp.bfloat16)

    # Query-row tile: whole sequence when small, 256-row tiles when large (v6e/v7x
    # MXU fill; keeps the f32 logits block modest for v7x's 64 MiB VMEM).
    tq = Lq if Lq <= 256 else 256
    grid = (B, pl.cdiv(Lq, tq))   # both axes independent -> "parallel" (v7x 2 TCs)

    # Advisory cost estimate so XLA can schedule around the custom call.
    flops = 4 * B * D * D * (Lq + Lk) + 4 * B * Lq * Lk * D
    transcendentals = B * n_head * Lq * Lk + B * Lq * (n_head + 1)
    bytes_accessed = (4 * B * Lq * D            # q in (f32)
                      + 2 * 2 * B * Lk * D      # k, v in (bf16)
                      + 4 * 2 * D * D           # 4 weight matrices (bf16)
                      + 2 * 4 * D               # gamma, beta (f32)
                      + 4 * B * Lq * D)         # out (f32)
    cost = pl.CostEstimate(flops=flops, transcendentals=transcendentals,
                           bytes_accessed=bytes_accessed)

    out = pl.pallas_call(
        functools.partial(mha_kernel, n_head=n_head),
        out_shape=jax.ShapeDtypeStruct((B, Lq, D), q.dtype),
        grid=grid,
        in_specs=[
            pl.BlockSpec((None, tq, D), lambda b, i: (b, i, 0)),   # q tile
            pl.BlockSpec((None, Lk, D), lambda b, i: (b, 0, 0)),   # k (resident per b)
            pl.BlockSpec((None, Lk, D), lambda b, i: (b, 0, 0)),   # v (resident per b)
            pl.BlockSpec((D, D), lambda b, i: (0, 0)),             # wq
            pl.BlockSpec((D, D), lambda b, i: (0, 0)),             # wk
            pl.BlockSpec((D, D), lambda b, i: (0, 0)),             # wv
            pl.BlockSpec((D, D), lambda b, i: (0, 0)),             # wo (single matrix)
            pl.BlockSpec((1, D), lambda b, i: (0, 0)),             # ln gamma
            pl.BlockSpec((1, D), lambda b, i: (0, 0)),             # ln beta
        ],
        out_specs=pl.BlockSpec((None, tq, D), lambda b, i: (b, i, 0)),
        compiler_params=pltpu.CompilerParams(
            dimension_semantics=("parallel", "parallel"),
            # footprint here is < 1 MiB; cap well inside v7x's 64 MiB physical VMEM
            vmem_limit_bytes=32 * 1024 * 1024,
        ),
        cost_estimate=cost,
    )(q, k_bf, v_bf,
      params["wq"], params["wk"], params["wv"], params["wo"],
      params["gamma"], params["beta"])
    return out


# ---------------------------------------------------------------------------
# Pure-JAX f32 reference (same math as the PyTorch module) for correctness check
# ---------------------------------------------------------------------------
def reference_mha(q, k, v, wq, wk, wv, wo, gamma, beta, n_head):
    B, Lq, D = q.shape
    Lk = k.shape[1]
    dk = D // n_head
    scale = 1.0 / float(dk) ** 0.5
    qp = (q.reshape(B * Lq, D) @ wq).reshape(B, Lq, n_head, dk).transpose(0, 2, 1, 3)
    kp = (k.reshape(B * Lk, D) @ wk).reshape(B, Lk, n_head, dk).transpose(0, 2, 1, 3)
    vp = (v.reshape(B * Lk, D) @ wv).reshape(B, Lk, n_head, dk).transpose(0, 2, 1, 3)
    attn = jax.nn.softmax(jnp.einsum('bhqd,bhkd->bhqk', qp * scale, kp), axis=-1)
    ctx = jnp.einsum('bhqk,bhkd->bhqd', attn, vp).transpose(0, 2, 1, 3).reshape(B, Lq, D)
    out = ctx @ wo + q
    return _layernorm(out, gamma, beta)


if __name__ == "__main__":
    # Small shapes consistent with the module; d_model chosen lane-dense (=128).
    B, S, d_model, n_head = 2, 8, 128, 4

    key = jax.random.PRNGKey(0)
    kq, kk, kv, k1, k2, k3, k4 = jax.random.split(key, 7)
    q = jax.random.normal(kq, (B, S, d_model), jnp.float32)
    k = jax.random.normal(kk, (B, S, d_model), jnp.float32)
    v = jax.random.normal(kv, (B, S, d_model), jnp.float32)

    def xavier(rk, fan_in, fan_out):
        lim = float(np.sqrt(6.0 / (fan_in + fan_out)))
        return jax.random.uniform(rk, (fan_in, fan_out), jnp.float32, -lim, lim)

    # Weights stored (in, out) so the kernel computes x @ W (== x @ W.T for a
    # PyTorch (out, in) weight). bf16 storage halves DMA bytes / VMEM footprint.
    params = dict(
        wq=xavier(k1, d_model, d_model).astype(jnp.bfloat16),
        wk=xavier(k2, d_model, d_model).astype(jnp.bfloat16),
        wv=xavier(k3, d_model, d_model).astype(jnp.bfloat16),
        wo=xavier(k4, d_model, d_model).astype(jnp.bfloat16),
        gamma=jnp.ones((1, d_model), jnp.float32),
        beta=jnp.zeros((1, d_model), jnp.float32),
    )

    out = multi_head_attention(q, k, v, params, n_head)
    out = jax.block_until_ready(out)
    assert out.shape == (B, S, d_model), out.shape

    ref = reference_mha(
        q, k, v,
        params["wq"].astype(jnp.float32),
        params["wk"].astype(jnp.float32),
        params["wv"].astype(jnp.float32),
        params["wo"].astype(jnp.float32),
        params["gamma"], params["beta"], n_head)
    # bf16 MXU operands (f32 accumulation) + approx reciprocal vs. f32 reference.
    np.testing.assert_allclose(np.asarray(out), np.asarray(ref), rtol=3e-2, atol=3e-2)

    print("KERNEL_OK")
</pallas_src>

<mosaic_0001>
module attributes {stable_mosaic.version = 11 : i64} {
  func.func @mha_kernel(%arg0: i32, %arg1: i32, %arg2: memref<1x8x128xf32, #tpu.memory_space<vmem>>, %arg3: memref<1x8x128xbf16, #tpu.memory_space<vmem>>, %arg4: memref<1x8x128xbf16, #tpu.memory_space<vmem>>, %arg5: memref<128x128xbf16, #tpu.memory_space<vmem>>, %arg6: memref<128x128xbf16, #tpu.memory_space<vmem>>, %arg7: memref<128x128xbf16, #tpu.memory_space<vmem>>, %arg8: memref<128x128xbf16, #tpu.memory_space<vmem>>, %arg9: memref<1x128xf32, #tpu.memory_space<vmem>>, %arg10: memref<1x128xf32, #tpu.memory_space<vmem>>, %arg11: memref<1x8x128xf32, #tpu.memory_space<vmem>>) attributes {dimension_semantics = [#tpu.dimension_semantics<parallel>, #tpu.dimension_semantics<parallel>], iteration_bounds = array<i64: 2, 1>, scalar_prefetch = 0 : i64, scratch_operands = 0 : i64, tpu.core_type = #tpu.core_type<tc>, window_params = [{transform_indices = @transform_0, window_bounds = array<i64: 1, 8, 128>}, {transform_indices = @transform_1, window_bounds = array<i64: 1, 8, 128>}, {transform_indices = @transform_2, window_bounds = array<i64: 1, 8, 128>}, {pipeline_mode = #tpu.pipeline_mode<synchronous>, transform_indices = @transform_3, window_bounds = array<i64: 128, 128>}, {pipeline_mode = #tpu.pipeline_mode<synchronous>, transform_indices = @transform_4, window_bounds = array<i64: 128, 128>}, {pipeline_mode = #tpu.pipeline_mode<synchronous>, transform_indices = @transform_5, window_bounds = array<i64: 128, 128>}, {pipeline_mode = #tpu.pipeline_mode<synchronous>, transform_indices = @transform_6, window_bounds = array<i64: 128, 128>}, {pipeline_mode = #tpu.pipeline_mode<synchronous>, transform_indices = @transform_7, window_bounds = array<i64: 1, 128>}, {pipeline_mode = #tpu.pipeline_mode<synchronous>, transform_indices = @transform_8, window_bounds = array<i64: 1, 128>}, {transform_indices = @transform_9, window_bounds = array<i64: 1, 8, 128>}]} {
    %c0 = arith.constant 0 : index
    %c0_0 = arith.constant 0 : index
    %c0_1 = arith.constant 0 : index
    %0 = vector.load %arg2[%c0, %c0_0, %c0_1] : memref<1x8x128xf32, #tpu.memory_space<vmem>>, vector<1x8x128xf32>
    %1 = vector.shape_cast %0 : vector<1x8x128xf32> to vector<8x128xf32>
    %2 = arith.truncf %1 : vector<8x128xf32> to vector<8x128xbf16>
    %c0_2 = arith.constant 0 : index
    %c0_3 = arith.constant 0 : index
    %3 = vector.load %arg5[%c0_2, %c0_3] : memref<128x128xbf16, #tpu.memory_space<vmem>>, vector<128x128xbf16>
    %cst = arith.constant dense<0.000000e+00> : vector<8x128xf32>
    %4 = tpu.matmul %2, %3, %cst {dimension_numbers = #tpu.dot_dimension_numbers<[1], [0], [0], [1], [0, 0, 1, 1], [], []>} : vector<8x128xbf16>, vector<128x128xbf16>, vector<8x128xf32> -> vector<8x128xf32>
    %cst_4 = arith.constant 0.176776692 : f32
    %5 = vector.broadcast %cst_4 : f32 to vector<8x128xf32>
    %6 = arith.mulf %4, %5 : vector<8x128xf32>
    %c0_5 = arith.constant 0 : index
    %c0_6 = arith.constant 0 : index
    %c0_7 = arith.constant 0 : index
    %7 = vector.load %arg3[%c0_5, %c0_6, %c0_7] : memref<1x8x128xbf16, #tpu.memory_space<vmem>>, vector<1x8x128xbf16>
    %8 = vector.shape_cast %7 : vector<1x8x128xbf16> to vector<8x128xbf16>
    %c0_8 = arith.constant 0 : index
    %c0_9 = arith.constant 0 : index
    %9 = vector.load %arg6[%c0_8, %c0_9] : memref<128x128xbf16, #tpu.memory_space<vmem>>, vector<128x128xbf16>
    %cst_10 = arith.constant dense<0.000000e+00> : vector<8x128xf32>
    %10 = tpu.matmul %8, %9, %cst_10 {dimension_numbers = #tpu.dot_dimension_numbers<[1], [0], [0], [1], [0, 0, 1, 1], [], []>} : vector<8x128xbf16>, vector<128x128xbf16>, vector<8x128xf32> -> vector<8x128xf32>
    %c0_11 = arith.constant 0 : index
    %c0_12 = arith.constant 0 : index
    %c0_13 = arith.constant 0 : index
    %11 = vector.load %arg4[%c0_11, %c0_12, %c0_13] : memref<1x8x128xbf16, #tpu.memory_space<vmem>>, vector<1x8x128xbf16>
    %12 = vector.shape_cast %11 : vector<1x8x128xbf16> to vector<8x128xbf16>
    %c0_14 = arith.constant 0 : index
    %c0_15 = arith.constant 0 : index
    %13 = vector.load %arg7[%c0_14, %c0_15] : memref<128x128xbf16, #tpu.memory_space<vmem>>, vector<128x128xbf16>
    %cst_16 = arith.constant dense<0.000000e+00> : vector<8x128xf32>
    %14 = tpu.matmul %12, %13, %cst_16 {dimension_numbers = #tpu.dot_dimension_numbers<[1], [0], [0], [1], [0, 0, 1, 1], [], []>} : vector<8x128xbf16>, vector<128x128xbf16>, vector<8x128xf32> -> vector<8x128xf32>
    %15 = vector.shape_cast %6 : vector<8x128xf32> to vector<8x4x32xf32>
    %16 = tpu.transpose %15, [1, 0, 2] : vector<8x4x32xf32> -> vector<4x8x32xf32>
    %17 = arith.truncf %16 : vector<4x8x32xf32> to vector<4x8x32xbf16>
    %18 = vector.shape_cast %10 : vector<8x128xf32> to vector<8x4x32xf32>
    %19 = tpu.transpose %18, [1, 0, 2] : vector<8x4x32xf32> -> vector<4x8x32xf32>
    %20 = arith.truncf %19 : vector<4x8x32xf32> to vector<4x8x32xbf16>
    %21 = vector.shape_cast %14 : vector<8x128xf32> to vector<8x4x32xf32>
    %22 = tpu.transpose %21, [1, 0, 2] : vector<8x4x32xf32> -> vector<4x8x32xf32>
    %23 = arith.truncf %22 : vector<4x8x32xf32> to vector<4x8x32xbf16>
    "tpu.trace_start"() <{level = 10 : i32, message = "hqd,hkd->hqk"}> : () -> ()
    %cst_17 = arith.constant dense<0.000000e+00> : vector<4x8x8xf32>
    %24 = tpu.matmul %17, %20, %cst_17 {dimension_numbers = #tpu.dot_dimension_numbers<[2], [2], [1], [1], [0, 0, 0, 1, 1, 1], [0], [0]>} : vector<4x8x32xbf16>, vector<4x8x32xbf16>, vector<4x8x8xf32> -> vector<4x8x8xf32>
    "tpu.trace_stop"() : () -> ()
    %cst_18 = arith.constant dense<0xFF800000> : vector<4x8xf32>
    %25 = vector.multi_reduction <maximumf>, %24, %cst_18 [2] : vector<4x8x8xf32> to vector<4x8xf32>
    %26 = vector.shape_cast %25 : vector<4x8xf32> to vector<4x8x1xf32>
    %27 = vector.broadcast %26 : vector<4x8x1xf32> to vector<4x8x8xf32>
    %28 = arith.subf %24, %27 : vector<4x8x8xf32>
    %29 = math.exp %28 : vector<4x8x8xf32>
    %cst_19 = arith.constant dense<0.000000e+00> : vector<4x8xf32>
    %30 = vector.multi_reduction <add>, %29, %cst_19 [2] : vector<4x8x8xf32> to vector<4x8xf32>
    %31 = vector.shape_cast %30 : vector<4x8xf32> to vector<4x8x1xf32>
    %32 = tpu.reciprocal %31 {approx = true} : vector<4x8x1xf32> -> vector<4x8x1xf32>
    %33 = arith.truncf %29 : vector<4x8x8xf32> to vector<4x8x8xbf16>
    "tpu.trace_start"() <{level = 10 : i32, message = "hqk,hkd->hqd"}> : () -> ()
    %cst_20 = arith.constant dense<0.000000e+00> : vector<4x8x32xf32>
    %34 = tpu.matmul %33, %23, %cst_20 {dimension_numbers = #tpu.dot_dimension_numbers<[2], [1], [1], [2], [0, 0, 0, 1, 1, 2], [0], [0]>} : vector<4x8x8xbf16>, vector<4x8x32xbf16>, vector<4x8x32xf32> -> vector<4x8x32xf32>
    "tpu.trace_stop"() : () -> ()
    %35 = vector.broadcast %32 : vector<4x8x1xf32> to vector<4x8x32xf32>
    %36 = arith.mulf %34, %35 : vector<4x8x32xf32>
    %37 = tpu.transpose %36, [1, 0, 2] : vector<4x8x32xf32> -> vector<8x4x32xf32>
    %38 = vector.shape_cast %37 : vector<8x4x32xf32> to vector<8x128xf32>
    %39 = arith.truncf %38 : vector<8x128xf32> to vector<8x128xbf16>
    %c0_21 = arith.constant 0 : index
    %c0_22 = arith.constant 0 : index
    %40 = vector.load %arg8[%c0_21, %c0_22] : memref<128x128xbf16, #tpu.memory_space<vmem>>, vector<128x128xbf16>
    %cst_23 = arith.constant dense<0.000000e+00> : vector<8x128xf32>
    %41 = tpu.matmul %39, %40, %cst_23 {dimension_numbers = #tpu.dot_dimension_numbers<[1], [0], [0], [1], [0, 0, 1, 1], [], []>} : vector<8x128xbf16>, vector<128x128xbf16>, vector<8x128xf32> -> vector<8x128xf32>
    %42 = arith.addf %41, %1 : vector<8x128xf32>
    %c0_24 = arith.constant 0 : index
    %c0_25 = arith.constant 0 : index
    %43 = vector.load %arg9[%c0_24, %c0_25] : memref<1x128xf32, #tpu.memory_space<vmem>>, vector<1x128xf32>
    %c0_26 = arith.constant 0 : index
    %c0_27 = arith.constant 0 : index
    %44 = vector.load %arg10[%c0_26, %c0_27] : memref<1x128xf32, #tpu.memory_space<vmem>>, vector<1x128xf32>
    %cst_28 = arith.constant dense<0.000000e+00> : vector<8xf32>
    %45 = vector.multi_reduction <add>, %42, %cst_28 [1] : vector<8x128xf32> to vector<8xf32>
    %46 = vector.shape_cast %45 : vector<8xf32> to vector<8x1xf32>
    %cst_29 = arith.constant 1.280000e+02 : f32
    %47 = vector.broadcast %cst_29 : f32 to vector<8x1xf32>
    %48 = arith.divf %46, %47 : vector<8x1xf32>
    %49 = vector.broadcast %48 : vector<8x1xf32> to vector<8x128xf32>
    %50 = arith.subf %42, %49 : vector<8x128xf32>
    %51 = arith.mulf %50, %50 : vector<8x128xf32>
    %cst_30 = arith.constant dense<0.000000e+00> : vector<8xf32>
    %52 = vector.multi_reduction <add>, %51, %cst_30 [1] : vector<8x128xf32> to vector<8xf32>
    %53 = vector.shape_cast %52 : vector<8xf32> to vector<8x1xf32>
    %cst_31 = arith.constant 1.280000e+02 : f32
    %54 = vector.broadcast %cst_31 : f32 to vector<8x1xf32>
    %55 = arith.divf %53, %54 : vector<8x1xf32>
    %56 = vector.broadcast %48 : vector<8x1xf32> to vector<8x128xf32>
    %57 = arith.subf %42, %56 : vector<8x128xf32>
    %cst_32 = arith.constant 9.99999997E-7 : f32
    %58 = vector.broadcast %cst_32 : f32 to vector<8x1xf32>
    %59 = arith.addf %55, %58 : vector<8x1xf32>
    %60 = math.rsqrt %59 : vector<8x1xf32>
    %61 = vector.broadcast %60 : vector<8x1xf32> to vector<8x128xf32>
    %62 = arith.mulf %57, %61 : vector<8x128xf32>
    %63 = vector.broadcast %43 : vector<1x128xf32> to vector<8x128xf32>
    %64 = arith.mulf %62, %63 : vector<8x128xf32>
    %65 = vector.broadcast %44 : vector<1x128xf32> to vector<8x128xf32>
    %66 = arith.addf %64, %65 : vector<8x128xf32>
    %c0_33 = arith.constant 0 : index
    %c0_34 = arith.constant 0 : index
    %c0_35 = arith.constant 0 : index
    %67 = vector.load %arg11[%c0_33, %c0_34, %c0_35] : memref<1x8x128xf32, #tpu.memory_space<vmem>>, vector<1x8x128xf32>
    %68 = vector.shape_cast %67 : vector<1x8x128xf32> to vector<8x128xf32>
    %69 = vector.shape_cast %66 : vector<8x128xf32> to vector<1x8x128xf32>
    tpu.vector_store %arg11[%c0_33, %c0_34, %c0_35], %69 {strides = array<i32>} : memref<1x8x128xf32, #tpu.memory_space<vmem>>, vector<1x8x128xf32>,
    return
  }
  func.func @transform_0(%arg0: i32, %arg1: i32) -> (i32, i32, i32) {
    %c0_i32 = arith.constant 0 : i32
    %c0_i32_0 = arith.constant 0 : i32
    return %arg0, %arg1, %c0_i32 : i32, i32, i32
  }
  func.func @transform_1(%arg0: i32, %arg1: i32) -> (i32, i32, i32) {
    %c0_i32 = arith.constant 0 : i32
    %c0_i32_0 = arith.constant 0 : i32
    %c0_i32_1 = arith.constant 0 : i32
    return %arg0, %c0_i32, %c0_i32_0 : i32, i32, i32
  }
  func.func @transform_2(%arg0: i32, %arg1: i32) -> (i32, i32, i32) {
    %c0_i32 = arith.constant 0 : i32
    %c0_i32_0 = arith.constant 0 : i32
    %c0_i32_1 = arith.constant 0 : i32
    return %arg0, %c0_i32, %c0_i32_0 : i32, i32, i32
  }
  func.func @transform_3(%arg0: i32, %arg1: i32) -> (i32, i32) {
    %c0_i32 = arith.constant 0 : i32
    %c0_i32_0 = arith.constant 0 : i32
    %c0_i32_1 = arith.constant 0 : i32
    return %c0_i32, %c0_i32_0 : i32, i32
  }
  func.func @transform_4(%arg0: i32, %arg1: i32) -> (i32, i32) {
    %c0_i32 = arith.constant 0 : i32
    %c0_i32_0 = arith.constant 0 : i32
    %c0_i32_1 = arith.constant 0 : i32
    return %c0_i32, %c0_i32_0 : i32, i32
  }
  func.func @transform_5(%arg0: i32, %arg1: i32) -> (i32, i32) {
    %c0_i32 = arith.constant 0 : i32
    %c0_i32_0 = arith.constant 0 : i32
    %c0_i32_1 = arith.constant 0 : i32
    return %c0_i32, %c0_i32_0 : i32, i32
  }
  func.func @transform_6(%arg0: i32, %arg1: i32) -> (i32, i32) {
    %c0_i32 = arith.constant 0 : i32
    %c0_i32_0 = arith.constant 0 : i32
    %c0_i32_1 = arith.constant 0 : i32
    return %c0_i32, %c0_i32_0 : i32, i32
  }
  func.func @transform_7(%arg0: i32, %arg1: i32) -> (i32, i32) {
    %c0_i32 = arith.constant 0 : i32
    %c0_i32_0 = arith.constant 0 : i32
    %c0_i32_1 = arith.constant 0 : i32
    return %c0_i32, %c0_i32_0 : i32, i32
  }
  func.func @transform_8(%arg0: i32, %arg1: i32) -> (i32, i32) {
    %c0_i32 = arith.constant 0 : i32
    %c0_i32_0 = arith.constant 0 : i32
    %c0_i32_1 = arith.constant 0 : i32
    return %c0_i32, %c0_i32_0 : i32, i32
  }
  func.func @transform_9(%arg0: i32, %arg1: i32) -> (i32, i32, i32) {
    %c0_i32 = arith.constant 0 : i32
    %c0_i32_0 = arith.constant 0 : i32
    return %arg0, %arg1, %c0_i32 : i32, i32, i32
  }
}

</mosaic_0001>

<llo_original>
// kernel: tpu_custom_call.1
$region0: #{tpu_custom_call.1}
  #allocation0 [shape = 'u32[]', space=smem, size = 0x4, offset = 0x4, fixed_abs, tag = 'smem constant byte address 0x4 - core index']
  #allocation1 [shape = 'u32[144,128]{1,0:T(1,128)}', space=vmem, size = 0x12000, scoped, tag = 'internal scratch']
  %s0 = inlined_call_operand.hbm [shape: f32[2,8,128], index: 0, kind: input, shape index: {}]
  %s1 = inlined_call_operand.hbm [shape: bf16[2,8,128], index: 1, kind: input, shape index: {}]
  %s2 = inlined_call_operand.hbm [shape: bf16[2,8,128], index: 2, kind: input, shape index: {}]
  %s3 = inlined_call_operand.hbm [shape: bf16[128,128], index: 3, kind: input, shape index: {}]
  %s4 = inlined_call_operand.hbm [shape: bf16[128,128], index: 4, kind: input, shape index: {}]
  %s5 = inlined_call_operand.hbm [shape: bf16[128,128], index: 5, kind: input, shape index: {}]
  %s6 = inlined_call_operand.hbm [shape: bf16[128,128], index: 6, kind: input, shape index: {}]
  %s7 = inlined_call_operand.vmem [shape: f32[1,128], index: 7, kind: input, shape index: {}]
  %s8 = inlined_call_operand.vmem [shape: f32[1,128], index: 8, kind: input, shape index: {}]
  %s9 = inlined_call_operand.hbm [shape: f32[2,8,128], index: 9, kind: output, shape index: {}]
  %s10 = sld [smem:[#allocation0]]
  $region97: #{tpu_custom_call.1} parent=0
    _
  %s12 = ssub.s32 1, %s10
  %s13 = scalar_select 0, %s12, %s10
  $region1: #{tpu_custom_call.1} parent=0
    #allocation2 [shape = 'u8[8192]{0}', space=vmem, size = 0x2000, scoped, tag = 'input window, operand 0']
    #allocation3 [shape = 's32[2]{0}', space=sflag, size = 0x8, scoped, tag = 'scoped memory for tpu_custom_call.1']
    #allocation4 [shape = 's32[2]{0}', space=sflag, size = 0x8, scoped, tag = 'scoped memory for tpu_custom_call.1']
    #allocation5 [shape = 'u8[4096]{0}', space=vmem, size = 0x1000, scoped, tag = 'input window, operand 1']
    #allocation6 [shape = 's32[2]{0}', space=sflag, size = 0x8, scoped, tag = 'scoped memory for tpu_custom_call.1']
    #allocation7 [shape = 'u8[4096]{0}', space=vmem, size = 0x1000, scoped, tag = 'input window, operand 2']
    #allocation8 [shape = 'u8[32768]{0}', space=vmem, size = 0x8000, scoped, tag = 'input window, operand 3, single buffered']
    #allocation9 [shape = 's32[1]{0}', space=sflag, size = 0x4, scoped, tag = 'scoped memory for tpu_custom_call.1']
    #allocation10 [shape = 'u8[32768]{0}', space=vmem, size = 0x8000, scoped, tag = 'input window, operand 4, single buffered']
    #allocation11 [shape = 'u8[32768]{0}', space=vmem, size = 0x8000, scoped, tag = 'input window, operand 5, single buffered']
    #allocation12 [shape = 's32[1]{0}', space=sflag, size = 0x4, scoped, tag = 'scoped memory for tpu_custom_call.1']
    #allocation13 [shape = 'u8[32768]{0}', space=vmem, size = 0x8000, scoped, tag = 'input window, operand 6, single buffered']
    #allocation14 [shape = 'u8[8192]{0}', space=vmem, size = 0x2000, scoped, tag = 'output window, operand 0']
    %14 = vsyncpa [#allocation3], 0
    %s15 = scalar_lea.sflag [#allocation3], 1
    %16 = vsyncpa %s15, 0
    %17 = vsyncpa [#allocation6], 0
    %s18 = scalar_lea.sflag [#allocation6], 1
    %19 = vsyncpa %s18, 0
    %20 = vsyncpa [#allocation9], 0
    %21 = vsyncpa [#allocation12], 0
    %22 = vsyncpa [#allocation4], 0
    %s23 = scalar_lea.sflag [#allocation4], 1
    %24 = vsyncpa %s23, 0
    loop: start=0, step=1, limit=4
    $region2: #{tpu_custom_call.1} parent=1 // loop_pre_header
      _
    $region3: #{tpu_custom_call.1} parent=1 // loop_header
      %s26 = sphi 0, %s30
      %p27 = scmp.ge.s32.totalorder %s26, 4
      %s33 = sphi 0, %s45
      %s34 = sphi 0, %s41
      %s35 = sphi 0, %s33
      %s36 = sphi 0, %s34
      %s37 = sphi 0, %s35
      %s38 = sphi 0, %s36
      %s50 = sphi 0, %s52
      %s53 = sphi 0, %s50
      %s54 = sphi 0, %s53
      %s70 = sphi 0, %s54
      %s76 = sphi 0, %s78
      %s79 = sphi 0, %s76
      %s80 = sphi 0, %s79
      %s96 = sphi 0, %s80
      %s102 = sphi 0, %s104
      %s105 = sphi 0, %s102
      %s106 = sphi 0, %s105
      %s122 = sphi 0, %s106
      %s126 = sphi 0, %s126
      %s128 = sphi 0, %s126
      %s129 = sphi 0, %s128
      %s143 = sphi 0, %s129
      %s147 = sphi 0, %s147
      %s149 = sphi 0, %s147
      %s150 = sphi 0, %s149
      %s164 = sphi 0, %s150
      %s168 = sphi 0, %s168
      %s170 = sphi 0, %s168
      %s171 = sphi 0, %s170
      %s185 = sphi 0, %s171
      %s189 = sphi 0, %s189
      %s191 = sphi 0, %s189
      %s192 = sphi 0, %s191
      %s206 = sphi 0, %s192
      %s210 = sphi 0, %s210
      %s212 = sphi 0, %s210
      %s213 = sphi 0, %s212
      %s227 = sphi 0, %s213
      %s231 = sphi 0, %s231
      %s233 = sphi 0, %s231
      %s234 = sphi 0, %s233
      %s248 = sphi 0, %s234
      %s256 = sphi 0, %s258
      %s259 = sphi 0, %s256
      %s260 = sphi 0, %s259
      %s276 = sphi 0, %s260
    $region4: #{tpu_custom_call.1} parent=1 // loop_header_branch
      %29 = sbr.rel (%p27) target = $region8
    $region5: #{tpu_custom_call.1} parent=1 // loop_body
      %s31 = ssub.s32 %s26, 1
      %s32 = ssub.s32 %s26, 2
      %s39 = sadd.s32 1, %s34
      %p40 = scmp.ge.s32.totalorder %s39, 1
      %s41 = scalar_select %p40, 0, %s39
      %s42 = sadd.s32 1, %s33
      %s43 = scalar_select %p40, %s42, %s33
      %p44 = scmp.ge.s32.totalorder %s43, 2
      %s45 = scalar_select %p44, 0, %s43
      %s46 = ssub.s32 %s33, %s45
      %s47 = ssub.s32 %s34, %s41
      %s48 = sor.u32 %s46, %s47
      %p49 = scmp.eq.s32.totalorder %s48, 0
      %s51 = sadd.s32 %s50, 1
      %s52 = scalar_select %p49, %s50, %s51
      %p55 = pneg %p49
      %p56 = scmp.eq.s32.totalorder %s26, 1
      %p57 = por %p55, %p56
      %p58 = scmp.ne.s32.totalorder %s50, %s53
      %p59 = scmp.eq.s32.totalorder %s26, 0
      %p60 = por %p58, %p59
      %p61 = scmp.ne.s32.totalorder %s50, %s53
      %p62 = scmp.eq.s32.totalorder %s31, 1
      %p63 = por %p61, %p62
      %p64 = scmp.ne.s32.totalorder %s53, %s54
      %p65 = scmp.eq.s32.totalorder %s31, 0
      %p66 = por %p64, %p65
      %p67 = scmp.ne.s32.totalorder %s53, %s54
      %p68 = scmp.eq.s32.totalorder %s32, 1
      %p69 = por %p67, %p68
      %p71 = scmp.ne.s32.totalorder %s54, %s70
      %p72 = scmp.eq.s32.totalorder %s32, 0
      %p73 = por %p71, %p72
      %s74 = ssub.s32 %s33, %s45
      %p75 = scmp.eq.s32.totalorder %s74, 0
      %s77 = sadd.s32 %s76, 1
      %s78 = scalar_select %p75, %s76, %s77
      %p81 = pneg %p75
      %p82 = scmp.eq.s32.totalorder %s26, 1
      %p83 = por %p81, %p82
      %p84 = scmp.ne.s32.totalorder %s76, %s79
      %p85 = scmp.eq.s32.totalorder %s26, 0
      %p86 = por %p84, %p85
      %p87 = scmp.ne.s32.totalorder %s76, %s79
      %p88 = scmp.eq.s32.totalorder %s31, 1
      %p89 = por %p87, %p88
      %p90 = scmp.ne.s32.totalorder %s79, %s80
      %p91 = scmp.eq.s32.totalorder %s31, 0
      %p92 = por %p90, %p91
      %p93 = scmp.ne.s32.totalorder %s79, %s80
      %p94 = scmp.eq.s32.totalorder %s32, 1
      %p95 = por %p93, %p94
      %p97 = scmp.ne.s32.totalorder %s80, %s96
      %p98 = scmp.eq.s32.totalorder %s32, 0
      %p99 = por %p97, %p98
      %s100 = ssub.s32 %s33, %s45
      %p101 = scmp.eq.s32.totalorder %s100, 0
      %s103 = sadd.s32 %s102, 1
      %s104 = scalar_select %p101, %s102, %s103
      %p107 = pneg %p101
      %p108 = scmp.eq.s32.totalorder %s26, 1
      %p109 = por %p107, %p108
      %p110 = scmp.ne.s32.totalorder %s102, %s105
      %p111 = scmp.eq.s32.totalorder %s26, 0
      %p112 = por %p110, %p111
      %p113 = scmp.ne.s32.totalorder %s102, %s105
      %p114 = scmp.eq.s32.totalorder %s31, 1
      %p115 = por %p113, %p114
      %p116 = scmp.ne.s32.totalorder %s105, %s106
      %p117 = scmp.eq.s32.totalorder %s31, 0
      %p118 = por %p116, %p117
      %p119 = scmp.ne.s32.totalorder %s105, %s106
      %p120 = scmp.eq.s32.totalorder %s32, 1
      %p121 = por %p119, %p120
      %p123 = scmp.ne.s32.totalorder %s106, %s122
      %p124 = scmp.eq.s32.totalorder %s32, 0
      %p125 = por %p123, %p124
      %s127 = sadd.s32 %s126, 1
      %p130 = scmp.eq.s32.totalorder %s26, 1
      %p131 = scmp.ne.s32.totalorder %s126, %s128
      %p132 = scmp.eq.s32.totalorder %s26, 0
      %p133 = por %p131, %p132
      %p134 = scmp.ne.s32.totalorder %s126, %s128
      %p135 = scmp.eq.s32.totalorder %s31, 1
      %p136 = por %p134, %p135
      %p137 = scmp.ne.s32.totalorder %s128, %s129
      %p138 = scmp.eq.s32.totalorder %s31, 0
      %p139 = por %p137, %p138
      %p140 = scmp.ne.s32.totalorder %s128, %s129
      %p141 = scmp.eq.s32.totalorder %s32, 1
      %p142 = por %p140, %p141
      %p144 = scmp.ne.s32.totalorder %s129, %s143
      %p145 = scmp.eq.s32.totalorder %s32, 0
      %p146 = por %p144, %p145
      %s148 = sadd.s32 %s147, 1
      %p151 = scmp.eq.s32.totalorder %s26, 1
      %p152 = scmp.ne.s32.totalorder %s147, %s149
      %p153 = scmp.eq.s32.totalorder %s26, 0
      %p154 = por %p152, %p153
      %p155 = scmp.ne.s32.totalorder %s147, %s149
      %p156 = scmp.eq.s32.totalorder %s31, 1
      %p157 = por %p155, %p156
      %p158 = scmp.ne.s32.totalorder %s149, %s150
      %p159 = scmp.eq.s32.totalorder %s31, 0
      %p160 = por %p158, %p159
      %p161 = scmp.ne.s32.totalorder %s149, %s150
      %p162 = scmp.eq.s32.totalorder %s32, 1
      %p163 = por %p161, %p162
      %p165 = scmp.ne.s32.totalorder %s150, %s164
      %p166 = scmp.eq.s32.totalorder %s32, 0
      %p167 = por %p165, %p166
      %s169 = sadd.s32 %s168, 1
      %p172 = scmp.eq.s32.totalorder %s26, 1
      %p173 = scmp.ne.s32.totalorder %s168, %s170
      %p174 = scmp.eq.s32.totalorder %s26, 0
      %p175 = por %p173, %p174
      %p176 = scmp.ne.s32.totalorder %s168, %s170
      %p177 = scmp.eq.s32.totalorder %s31, 1
      %p178 = por %p176, %p177
      %p179 = scmp.ne.s32.totalorder %s170, %s171
      %p180 = scmp.eq.s32.totalorder %s31, 0
      %p181 = por %p179, %p180
      %p182 = scmp.ne.s32.totalorder %s170, %s171
      %p183 = scmp.eq.s32.totalorder %s32, 1
      %p184 = por %p182, %p183
      %p186 = scmp.ne.s32.totalorder %s171, %s185
      %p187 = scmp.eq.s32.totalorder %s32, 0
      %p188 = por %p186, %p187
      %s190 = sadd.s32 %s189, 1
      %p193 = scmp.eq.s32.totalorder %s26, 1
      %p194 = scmp.ne.s32.totalorder %s189, %s191
      %p195 = scmp.eq.s32.totalorder %s26, 0
      %p196 = por %p194, %p195
      %p197 = scmp.ne.s32.totalorder %s189, %s191
      %p198 = scmp.eq.s32.totalorder %s31, 1
      %p199 = por %p197, %p198
      %p200 = scmp.ne.s32.totalorder %s191, %s192
      %p201 = scmp.eq.s32.totalorder %s31, 0
      %p202 = por %p200, %p201
      %p203 = scmp.ne.s32.totalorder %s191, %s192
      %p204 = scmp.eq.s32.totalorder %s32, 1
      %p205 = por %p203, %p204
      %p207 = scmp.ne.s32.totalorder %s192, %s206
      %p208 = scmp.eq.s32.totalorder %s32, 0
      %p209 = por %p207, %p208
      %s211 = sadd.s32 %s210, 1
      %p214 = scmp.eq.s32.totalorder %s26, 1
      %p215 = scmp.ne.s32.totalorder %s210, %s212
      %p216 = scmp.eq.s32.totalorder %s26, 0
      %p217 = por %p215, %p216
      %p218 = scmp.ne.s32.totalorder %s210, %s212
      %p219 = scmp.eq.s32.totalorder %s31, 1
      %p220 = por %p218, %p219
      %p221 = scmp.ne.s32.totalorder %s212, %s213
      %p222 = scmp.eq.s32.totalorder %s31, 0
      %p223 = por %p221, %p222
      %p224 = scmp.ne.s32.totalorder %s212, %s213
      %p225 = scmp.eq.s32.totalorder %s32, 1
      %p226 = por %p224, %p225
      %p228 = scmp.ne.s32.totalorder %s213, %s227
      %p229 = scmp.eq.s32.totalorder %s32, 0
      %p230 = por %p228, %p229
      %s232 = sadd.s32 %s231, 1
      %p235 = scmp.eq.s32.totalorder %s26, 1
      %p236 = scmp.ne.s32.totalorder %s231, %s233
      %p237 = scmp.eq.s32.totalorder %s26, 0
      %p238 = por %p236, %p237
      %p239 = scmp.ne.s32.totalorder %s231, %s233
      %p240 = scmp.eq.s32.totalorder %s31, 1
      %p241 = por %p239, %p240
      %p242 = scmp.ne.s32.totalorder %s233, %s234
      %p243 = scmp.eq.s32.totalorder %s31, 0
      %p244 = por %p242, %p243
      %p245 = scmp.ne.s32.totalorder %s233, %s234
      %p246 = scmp.eq.s32.totalorder %s32, 1
      %p247 = por %p245, %p246
      %p249 = scmp.ne.s32.totalorder %s234, %s248
      %p250 = scmp.eq.s32.totalorder %s32, 0
      %p251 = por %p249, %p250
      %s252 = ssub.s32 %s33, %s45
      %s253 = ssub.s32 %s34, %s41
      %s254 = sor.u32 %s252, %s253
      %p255 = scmp.eq.s32.totalorder %s254, 0
      %s257 = sadd.s32 %s256, 1
      %s258 = scalar_select %p255, %s256, %s257
      %p261 = pneg %p255
      %p262 = scmp.eq.s32.totalorder %s26, 1
      %p263 = por %p261, %p262
      %p264 = scmp.ne.s32.totalorder %s256, %s259
      %p265 = scmp.eq.s32.totalorder %s26, 0
      %p266 = por %p264, %p265
      %p267 = scmp.ne.s32.totalorder %s256, %s259
      %p268 = scmp.eq.s32.totalorder %s31, 1
      %p269 = por %p267, %p268
      %p270 = scmp.ne.s32.totalorder %s259, %s260
      %p271 = scmp.eq.s32.totalorder %s31, 0
      %p272 = por %p270, %p271
      %p273 = scmp.ne.s32.totalorder %s259, %s260
      %p274 = scmp.eq.s32.totalorder %s32, 1
      %p275 = por %p273, %p274
      %p277 = scmp.ne.s32.totalorder %s260, %s276
      %p278 = scmp.eq.s32.totalorder %s32, 0
      %p279 = por %p277, %p278
      %p280 = scmp.le.s32.totalorder 1, %s26
      %p281 = scmp.lt.s32.totalorder %s26, 3
      %p282 = pnand %p280, %p281
      %p283 = pneg %p282
      // Predicated region
      $region9: #{tpu_custom_call.1} parent=5 // pred_check
        _
      $region10: #{tpu_custom_call.1} parent=5 // pred_check_branch
        %285 = sbr.rel (%p282) target = $region12
      $region11: #{tpu_custom_call.1} parent=5 // pred_region
        %s286 = ssub.s32 %s26, 1
        // Predicated region
        $region13: #{tpu_custom_call.1} parent=11 // pred_check
          %p287 = pneg %p139
        $region14: #{tpu_custom_call.1} parent=11 // pred_check_branch
          %289 = sbr.rel (%p287) target = $region16
        $region15: #{tpu_custom_call.1} parent=11 // pred_region
          %s291 = ssub.s32 1024, 1024
          %292 = vsyncadd [#allocation9], %s291
          %s293 = sshll.u32 [#allocation8], 4
          %s294 = int_to_ptr.vmem [resolvable:$true] %s293
          %299 = dma.hbm_to_vmem [thread:$0]  %s3, 1024, %s294, [#allocation9], 64, 64, 4
        $region16: #{tpu_custom_call.1} parent=11 // pred_fallthru
          _
        // Predicated region
        $region17: #{tpu_custom_call.1} parent=11 // pred_check
          %p300 = pneg %p160
        $region18: #{tpu_custom_call.1} parent=11 // pred_check_branch
          %302 = sbr.rel (%p300) target = $region20
        $region19: #{tpu_custom_call.1} parent=11 // pred_region
          %s304 = ssub.s32 1024, 1024
          %305 = vsyncadd [#allocation9], %s304
          %s306 = sshll.u32 [#allocation10], 4
          %s307 = int_to_ptr.vmem [resolvable:$true] %s306
          %312 = dma.hbm_to_vmem [thread:$0]  %s4, 1024, %s307, [#allocation9], 64, 64, 4
        $region20: #{tpu_custom_call.1} parent=11 // pred_fallthru
          _
        // Predicated region
        $region21: #{tpu_custom_call.1} parent=11 // pred_check
          %p313 = pneg %p181
        $region22: #{tpu_custom_call.1} parent=11 // pred_check_branch
          %315 = sbr.rel (%p313) target = $region24
        $region23: #{tpu_custom_call.1} parent=11 // pred_region
          %s317 = ssub.s32 1024, 1024
          %318 = vsyncadd [#allocation12], %s317
          %s319 = sshll.u32 [#allocation11], 4
          %s320 = int_to_ptr.vmem [resolvable:$true] %s319
          %325 = dma.hbm_to_vmem [thread:$0]  %s5, 1024, %s320, [#allocation12], 64, 64, 4
        $region24: #{tpu_custom_call.1} parent=11 // pred_fallthru
          _
        // Predicated region
        $region25: #{tpu_custom_call.1} parent=11 // pred_check
          %p326 = pneg %p202
        $region26: #{tpu_custom_call.1} parent=11 // pred_check_branch
          %328 = sbr.rel (%p326) target = $region28
        $region27: #{tpu_custom_call.1} parent=11 // pred_region
          %s330 = ssub.s32 1024, 1024
          %331 = vsyncadd [#allocation12], %s330
          %s332 = sshll.u32 [#allocation13], 4
          %s333 = int_to_ptr.vmem [resolvable:$true] %s332
          %338 = dma.hbm_to_vmem [thread:$0]  %s6, 1024, %s333, [#allocation12], 64, 64, 4
        $region28: #{tpu_custom_call.1} parent=11 // pred_fallthru
          _
        // Predicated region
        $region29: #{tpu_custom_call.1} parent=11 // pred_check
          %p339 = pneg %p223
        $region30: #{tpu_custom_call.1} parent=11 // pred_check_branch
          %341 = sbr.rel (%p339) target = $region32
        $region31: #{tpu_custom_call.1} parent=11 // pred_region
          _
        $region32: #{tpu_custom_call.1} parent=11 // pred_fallthru
          _
        // Predicated region
        $region33: #{tpu_custom_call.1} parent=11 // pred_check
          %p342 = pneg %p244
        $region34: #{tpu_custom_call.1} parent=11 // pred_check_branch
          %344 = sbr.rel (%p342) target = $region36
        $region35: #{tpu_custom_call.1} parent=11 // pred_region
          _
        $region36: #{tpu_custom_call.1} parent=11 // pred_fallthru
          _
      $region12: #{tpu_custom_call.1} parent=5 // pred_fallthru
        _
      %p345 = scmp.lt.s32.totalorder %s26, 2
      // Predicated region
      $region37: #{tpu_custom_call.1} parent=5 // pred_check
        %p346 = pneg %p345
      $region38: #{tpu_custom_call.1} parent=5 // pred_check_branch
        %348 = sbr.rel (%p346) target = $region40
      $region39: #{tpu_custom_call.1} parent=5 // pred_region
        // Predicated region
        $region41: #{tpu_custom_call.1} parent=39 // pred_check
          %p349 = pneg %p60
        $region42: #{tpu_custom_call.1} parent=39 // pred_check_branch
          %351 = sbr.rel (%p349) target = $region44
        $region43: #{tpu_custom_call.1} parent=39 // pred_region
          %s352 = sand.u32 %s50, 1
          %s353 = scalar_lea.sflag [#allocation3], %s352
          %s354 = sand.u32 %s50, 1
          %s355 = smul.addr %s354, 8
          %s356 = scalar_lea.vmem [#allocation2], %s355
          %s358 = ssub.s32 128, 128
          %359 = vsyncadd %s353, %s358
          %s360 = sadd.s32 %s34, %s33
          %s361 = smul.addr %s360, 128
          %s362 = scalar_lea.hbm %s0, %s361
          %s364 = sshll.u32 %s356, 4
          %s365 = int_to_ptr.vmem [resolvable:$true] %s364
          %367 = dma.hbm_to_vmem [thread:$0]  %s362, 128, %s365, %s353
        $region44: #{tpu_custom_call.1} parent=39 // pred_fallthru
          _
        // Predicated region
        $region45: #{tpu_custom_call.1} parent=39 // pred_check
          %p368 = pneg %p86
        $region46: #{tpu_custom_call.1} parent=39 // pred_check_branch
          %370 = sbr.rel (%p368) target = $region48
        $region47: #{tpu_custom_call.1} parent=39 // pred_region
          %s371 = sand.u32 %s26, 1
          %s372 = scalar_lea.sflag [#allocation6], %s371
          %s373 = sand.u32 %s76, 1
          %s374 = smul.addr %s373, 4
          %s375 = scalar_lea.vmem [#allocation5], %s374
          %s377 = ssub.s32 64, 64
          %378 = vsyncadd %s372, %s377
          %s379 = smul.addr %s33, 64
          %s380 = scalar_lea.hbm %s1, %s379
          %s382 = sshll.u32 %s375, 4
          %s383 = int_to_ptr.vmem [resolvable:$true] %s382
          %385 = dma.hbm_to_vmem [thread:$0]  %s380, 64, %s383, %s372
        $region48: #{tpu_custom_call.1} parent=39 // pred_fallthru
          _
        // Predicated region
        $region49: #{tpu_custom_call.1} parent=39 // pred_check
          %p386 = pneg %p112
        $region50: #{tpu_custom_call.1} parent=39 // pred_check_branch
          %388 = sbr.rel (%p386) target = $region52
        $region51: #{tpu_custom_call.1} parent=39 // pred_region
          %s389 = sand.u32 %s26, 1
          %s390 = scalar_lea.sflag [#allocation6], %s389
          %s391 = sand.u32 %s102, 1
          %s392 = smul.addr %s391, 4
          %s393 = scalar_lea.vmem [#allocation7], %s392
          %s395 = ssub.s32 64, 64
          %396 = vsyncadd %s390, %s395
          %s397 = smul.addr %s33, 64
          %s398 = scalar_lea.hbm %s2, %s397
          %s400 = sshll.u32 %s393, 4
          %s401 = int_to_ptr.vmem [resolvable:$true] %s400
          %403 = dma.hbm_to_vmem [thread:$0]  %s398, 64, %s401, %s390
        $region52: #{tpu_custom_call.1} parent=39 // pred_fallthru
          _
      $region40: #{tpu_custom_call.1} parent=5 // pred_fallthru
        _
      %p404 = scmp.le.s32.totalorder 1, %s26
      %p405 = scmp.lt.s32.totalorder %s26, 3
      %p406 = pnand %p404, %p405
      %p407 = pneg %p406
      // Predicated region
      $region53: #{tpu_custom_call.1} parent=5 // pred_check
        _
      $region54: #{tpu_custom_call.1} parent=5 // pred_check_branch
        %409 = sbr.rel (%p406) target = $region56
      $region55: #{tpu_custom_call.1} parent=5 // pred_region
        %s410 = ssub.s32 %s26, 1
        %s411 = sand.u32 %s53, 1
        %s412 = scalar_lea.sflag [#allocation3], %s411
        %s413 = sand.u32 %s53, 1
        %s414 = smul.addr %s413, 8
        %s415 = scalar_lea.vmem [#allocation2], %s414
        // Predicated region
        $region57: #{tpu_custom_call.1} parent=55 // pred_check
          %p416 = pneg %p66
        $region58: #{tpu_custom_call.1} parent=55 // pred_check_branch
          %418 = sbr.rel (%p416) target = $region60
        $region59: #{tpu_custom_call.1} parent=55 // pred_region
          %419 = dma.done %s412, 128
        $region60: #{tpu_custom_call.1} parent=55 // pred_fallthru
          _
        %s420 = sand.u32 %s31, 1
        %s421 = scalar_lea.sflag [#allocation6], %s420
        %s422 = sand.u32 %s79, 1
        %s423 = smul.addr %s422, 4
        %s424 = scalar_lea.vmem [#allocation5], %s423
        // Predicated region
        $region61: #{tpu_custom_call.1} parent=55 // pred_check
          %p425 = pneg %p92
        $region62: #{tpu_custom_call.1} parent=55 // pred_check_branch
          %427 = sbr.rel (%p425) target = $region64
        $region63: #{tpu_custom_call.1} parent=55 // pred_region
          %428 = dma.done %s421, 64
        $region64: #{tpu_custom_call.1} parent=55 // pred_fallthru
          _
        %s429 = sand.u32 %s31, 1
        %s430 = scalar_lea.sflag [#allocation6], %s429
        %s431 = sand.u32 %s105, 1
        %s432 = smul.addr %s431, 4
        %s433 = scalar_lea.vmem [#allocation7], %s432
        // Predicated region
        $region65: #{tpu_custom_call.1} parent=55 // pred_check
          %p434 = pneg %p118
        $region66: #{tpu_custom_call.1} parent=55 // pred_check_branch
          %436 = sbr.rel (%p434) target = $region68
        $region67: #{tpu_custom_call.1} parent=55 // pred_region
          %437 = dma.done %s430, 64
        $region68: #{tpu_custom_call.1} parent=55 // pred_fallthru
          _
        // Predicated region
        $region69: #{tpu_custom_call.1} parent=55 // pred_check
          %p438 = pneg %p139
        $region70: #{tpu_custom_call.1} parent=55 // pred_check_branch
          %440 = sbr.rel (%p438) target = $region72
        $region71: #{tpu_custom_call.1} parent=55 // pred_region
          %441 = dma.done [#allocation9], 1024
        $region72: #{tpu_custom_call.1} parent=55 // pred_fallthru
          _
        // Predicated region
        $region73: #{tpu_custom_call.1} parent=55 // pred_check
          %p442 = pneg %p160
        $region74: #{tpu_custom_call.1} parent=55 // pred_check_branch
          %444 = sbr.rel (%p442) target = $region76
        $region75: #{tpu_custom_call.1} parent=55 // pred_region
          %445 = dma.done [#allocation9], 1024
        $region76: #{tpu_custom_call.1} parent=55 // pred_fallthru
          _
        // Predicated region
        $region77: #{tpu_custom_call.1} parent=55 // pred_check
          %p446 = pneg %p181
        $region78: #{tpu_custom_call.1} parent=55 // pred_check_branch
          %448 = sbr.rel (%p446) target = $region80
        $region79: #{tpu_custom_call.1} parent=55 // pred_region
          %449 = dma.done [#allocation12], 1024
        $region80: #{tpu_custom_call.1} parent=55 // pred_fallthru
          _
        // Predicated region
        $region81: #{tpu_custom_call.1} parent=55 // pred_check
          %p450 = pneg %p202
        $region82: #{tpu_custom_call.1} parent=55 // pred_check_branch
          %452 = sbr.rel (%p450) target = $region84
        $region83: #{tpu_custom_call.1} parent=55 // pred_region
          %453 = dma.done [#allocation12], 1024
        $region84: #{tpu_custom_call.1} parent=55 // pred_fallthru
          _
        %s454 = sand.u32 %s53, 1
        %s455 = scalar_lea.sflag [#allocation3], %s454
        %s456 = sand.u32 %s53, 1
        %s457 = smul.addr %s456, 8
        %s458 = scalar_lea.vmem [#allocation2], %s457
        %p459 = pneg %p66
        %p460 = pneg %p63
        %s461 = sand.u32 %s31, 1
        %s462 = scalar_lea.sflag [#allocation6], %s461
        %s463 = sand.u32 %s79, 1
        %s464 = smul.addr %s463, 4
        %s465 = scalar_lea.vmem [#allocation5], %s464
        %p466 = pneg %p92
        %p467 = pneg %p89
        %s468 = sand.u32 %s31, 1
        %s469 = scalar_lea.sflag [#allocation6], %s468
        %s470 = sand.u32 %s105, 1
        %s471 = smul.addr %s470, 4
        %s472 = scalar_lea.vmem [#allocation7], %s471
        %p473 = pneg %p118
        %p474 = pneg %p115
        %p475 = pneg %p139
        %p476 = pneg %p136
        %p477 = pneg %p160
        %p478 = pneg %p157
        %p479 = pneg %p181
        %p480 = pneg %p178
        %p481 = pneg %p202
        %p482 = pneg %p199
        %p483 = pneg %p223
        %p484 = pneg %p220
        %p485 = pneg %p244
        %p486 = pneg %p241
        %p487 = pneg %p272
        %p488 = pneg %p269
        %s489 = sand.u32 %s259, 1
        %s490 = scalar_lea.sflag [#allocation4], %s489
        %s491 = sand.u32 %s259, 1
        %s492 = smul.addr %s491, 8
        %s493 = scalar_lea.vmem [#allocation14], %s492
        %v495 = vld [vmem:[%s415] sm:$0xff]
        %v496 = vpack.c.bf16 %v495, %v495
        %v497 = vld [vmem:[#allocation8] sm:$0xf]
        %v498 = vld [vmem:[#allocation8 + $0x4] sm:$0xf]
        %v499 = vld [vmem:[#allocation8 + $0x8] sm:$0xf]
        %v500 = vld [vmem:[#allocation8 + $0xc] sm:$0xf]
        %v501 = vld [vmem:[#allocation8 + $0x10] sm:$0xf]
        %v502 = vld [vmem:[#allocation8 + $0x14] sm:$0xf]
        %v503 = vld [vmem:[#allocation8 + $0x18] sm:$0xf]
        %v504 = vld [vmem:[#allocation8 + $0x1c] sm:$0xf]
        %v505 = vld [vmem:[#allocation8 + $0x20] sm:$0xf]
        %v506 = vld [vmem:[#allocation8 + $0x24] sm:$0xf]
        %v507 = vld [vmem:[#allocation8 + $0x28] sm:$0xf]
        %v508 = vld [vmem:[#allocation8 + $0x2c] sm:$0xf]
        %v509 = vld [vmem:[#allocation8 + $0x30] sm:$0xf]
        %v510 = vld [vmem:[#allocation8 + $0x34] sm:$0xf]
        %v511 = vld [vmem:[#allocation8 + $0x38] sm:$0xf]
        %v512 = vld [vmem:[#allocation8 + $0x3c] sm:$0xf]
        %v529 = vunpack.c.l.b16 %v497
        %v530 = vunpack.c.l.b16 %v498
        %v531 = vunpack.c.l.b16 %v499
        %v532 = vunpack.c.l.b16 %v500
        %v533 = vunpack.c.l.b16 %v501
        %v534 = vunpack.c.l.b16 %v502
        %v535 = vunpack.c.l.b16 %v503
        %v536 = vunpack.c.l.b16 %v504
        %v537 = vunpack.c.l.b16 %v505
        %v538 = vunpack.c.l.b16 %v506
        %v539 = vunpack.c.l.b16 %v507
        %v540 = vunpack.c.l.b16 %v508
        %v541 = vunpack.c.l.b16 %v509
        %v542 = vunpack.c.l.b16 %v510
        %v543 = vunpack.c.l.b16 %v511
        %v544 = vunpack.c.l.b16 %v512
        %v545 = vpack.c.b16 %v530, %v529
        %v546 = vpack.c.b16 %v532, %v531
        %v547 = vpack.c.b16 %v534, %v533
        %v548 = vpack.c.b16 %v536, %v535
        %v549 = vpack.c.b16 %v538, %v537
        %v550 = vpack.c.b16 %v540, %v539
        %v551 = vpack.c.b16 %v542, %v541
        %v552 = vpack.c.b16 %v544, %v543
        %561 = vmatprep.subr.bf16.mxu0 0
        %562 = vmatpush1.bf16.msra.mxu0 %v552
        %563 = vmatprep.subr.bf16.mxu0 0
        %564 = vmatpush1.bf16.msra.mxu0 %v551
        %565 = vmatprep.subr.bf16.mxu0 0
        %566 = vmatpush1.bf16.msra.mxu0 %v550
        %567 = vmatprep.subr.bf16.mxu0 0
        %568 = vmatpush1.bf16.msra.mxu0 %v549
        %569 = vmatprep.subr.bf16.mxu0 0
        %570 = vmatpush1.bf16.msra.mxu0 %v548
        %571 = vmatprep.subr.bf16.mxu0 0
        %572 = vmatpush1.bf16.msra.mxu0 %v547
        %573 = vmatprep.subr.bf16.mxu0 0
        %574 = vmatpush1.bf16.msra.mxu0 %v546
        %575 = vmatprep.subr.bf16.mxu0 0
        %576 = vmatpush1.bf16.msra.mxu0 %v545
        %577 = vmatprep.subr.bf16.mxu0 0
        %578 = vmatpush2.bf16.msra.mxu0 0
        %579 = vmatprep.subr.bf16.mxu0 0
        %580 = vmatpush2.bf16.msra.mxu0 0
        %581 = vmatprep.subr.bf16.mxu0 0
        %582 = vmatpush2.bf16.msra.mxu0 0
        %583 = vmatprep.subr.bf16.mxu0 0
        %584 = vmatpush2.bf16.msra.mxu0 0
        %585 = vmatprep.subr.bf16.mxu0 0
        %586 = vmatpush2.bf16.msra.mxu0 0
        %587 = vmatprep.subr.bf16.mxu0 0
        %588 = vmatpush2.bf16.msra.mxu0 0
        %589 = vmatprep.subr.bf16.mxu0 0
        %590 = vmatpush2.bf16.msra.mxu0 0
        %591 = vmatprep.subr.bf16.mxu0 0
        %592 = vmatpush2.bf16.msra.mxu0 0
        %593 = vmatprep.mubr.bf16.mxu0 0
        %594 = vmatmul.mubr.bf16.gmra.mxu0 %v496
        %v595 = vpop.f32.mrf.mxu0
        %v596 = vadd.f32 0.0, %v595
        %v597 = vpop.f32.mrf.mxu0
        %v598 = vpop.f32.mrf.mxu0
        %v599 = vpop.f32.mrf.mxu0
        %600 = vdwg.mxu0
        %v601 = vmul.f32 %v596, 0.17677669
        %v602 = vld [vmem:[%s424] sm:$0xf]
        %v603 = vld [vmem:[#allocation10] sm:$0xf]
        %v604 = vld [vmem:[#allocation10 + $0x4] sm:$0xf]
        %v605 = vld [vmem:[#allocation10 + $0x8] sm:$0xf]
        %v606 = vld [vmem:[#allocation10 + $0xc] sm:$0xf]
        %v607 = vld [vmem:[#allocation10 + $0x10] sm:$0xf]
        %v608 = vld [vmem:[#allocation10 + $0x14] sm:$0xf]
        %v609 = vld [vmem:[#allocation10 + $0x18] sm:$0xf]
        %v610 = vld [vmem:[#allocation10 + $0x1c] sm:$0xf]
        %v611 = vld [vmem:[#allocation10 + $0x20] sm:$0xf]
        %v612 = vld [vmem:[#allocation10 + $0x24] sm:$0xf]
        %v613 = vld [vmem:[#allocation10 + $0x28] sm:$0xf]
        %v614 = vld [vmem:[#allocation10 + $0x2c] sm:$0xf]
        %v615 = vld [vmem:[#allocation10 + $0x30] sm:$0xf]
        %v616 = vld [vmem:[#allocation10 + $0x34] sm:$0xf]
        %v617 = vld [vmem:[#allocation10 + $0x38] sm:$0xf]
        %v618 = vld [vmem:[#allocation10 + $0x3c] sm:$0xf]
        %v635 = vunpack.c.l.b16 %v603
        %v636 = vunpack.c.l.b16 %v604
        %v637 = vunpack.c.l.b16 %v605
        %v638 = vunpack.c.l.b16 %v606
        %v639 = vunpack.c.l.b16 %v607
        %v640 = vunpack.c.l.b16 %v608
        %v641 = vunpack.c.l.b16 %v609
        %v642 = vunpack.c.l.b16 %v610
        %v643 = vunpack.c.l.b16 %v611
        %v644 = vunpack.c.l.b16 %v612
        %v645 = vunpack.c.l.b16 %v613
        %v646 = vunpack.c.l.b16 %v614
        %v647 = vunpack.c.l.b16 %v615
        %v648 = vunpack.c.l.b16 %v616
        %v649 = vunpack.c.l.b16 %v617
        %v650 = vunpack.c.l.b16 %v618
        %v651 = vpack.c.b16 %v636, %v635
        %v652 = vpack.c.b16 %v638, %v637
        %v653 = vpack.c.b16 %v640, %v639
        %v654 = vpack.c.b16 %v642, %v641
        %v655 = vpack.c.b16 %v644, %v643
        %v656 = vpack.c.b16 %v646, %v645
        %v657 = vpack.c.b16 %v648, %v647
        %v658 = vpack.c.b16 %v650, %v649
        %667 = vmatprep.subr.bf16.mxu0 0
        %668 = vmatpush1.bf16.msra.mxu0 %v658
        %669 = vmatprep.subr.bf16.mxu0 0
        %670 = vmatpush1.bf16.msra.mxu0 %v657
        %671 = vmatprep.subr.bf16.mxu0 0
        %672 = vmatpush1.bf16.msra.mxu0 %v656
        %673 = vmatprep.subr.bf16.mxu0 0
        %674 = vmatpush1.bf16.msra.mxu0 %v655
        %675 = vmatprep.subr.bf16.mxu0 0
        %676 = vmatpush1.bf16.msra.mxu0 %v654
        %677 = vmatprep.subr.bf16.mxu0 0
        %678 = vmatpush1.bf16.msra.mxu0 %v653
        %679 = vmatprep.subr.bf16.mxu0 0
        %680 = vmatpush1.bf16.msra.mxu0 %v652
        %681 = vmatprep.subr.bf16.mxu0 0
        %682 = vmatpush1.bf16.msra.mxu0 %v651
        %683 = vmatprep.subr.bf16.mxu0 0
        %684 = vmatpush2.bf16.msra.mxu0 0
        %685 = vmatprep.subr.bf16.mxu0 0
        %686 = vmatpush2.bf16.msra.mxu0 0
        %687 = vmatprep.subr.bf16.mxu0 0
        %688 = vmatpush2.bf16.msra.mxu0 0
        %689 = vmatprep.subr.bf16.mxu0 0
        %690 = vmatpush2.bf16.msra.mxu0 0
        %691 = vmatprep.subr.bf16.mxu0 0
        %692 = vmatpush2.bf16.msra.mxu0 0
        %693 = vmatprep.subr.bf16.mxu0 0
        %694 = vmatpush2.bf16.msra.mxu0 0
        %695 = vmatprep.subr.bf16.mxu0 0
        %696 = vmatpush2.bf16.msra.mxu0 0
        %697 = vmatprep.subr.bf16.mxu0 0
        %698 = vmatpush2.bf16.msra.mxu0 0
        %699 = vmatprep.mubr.bf16.mxu0 0
        %700 = vmatmul.mubr.bf16.gmra.mxu0 %v602
        %v701 = vpop.f32.mrf.mxu0
        %v702 = vadd.f32 0.0, %v701
        %v703 = vpop.f32.mrf.mxu0
        %v704 = vpop.f32.mrf.mxu0
        %v705 = vpop.f32.mrf.mxu0
        %706 = vdwg.mxu0
        %v707 = vld [vmem:[%s433] sm:$0xf]
        %v708 = vld [vmem:[#allocation11] sm:$0xf]
        %v709 = vld [vmem:[#allocation11 + $0x4] sm:$0xf]
        %v710 = vld [vmem:[#allocation11 + $0x8] sm:$0xf]
        %v711 = vld [vmem:[#allocation11 + $0xc] sm:$0xf]
        %v712 = vld [vmem:[#allocation11 + $0x10] sm:$0xf]
        %v713 = vld [vmem:[#allocation11 + $0x14] sm:$0xf]
        %v714 = vld [vmem:[#allocation11 + $0x18] sm:$0xf]
        %v715 = vld [vmem:[#allocation11 + $0x1c] sm:$0xf]
        %v716 = vld [vmem:[#allocation11 + $0x20] sm:$0xf]
        %v717 = vld [vmem:[#allocation11 + $0x24] sm:$0xf]
        %v718 = vld [vmem:[#allocation11 + $0x28] sm:$0xf]
        %v719 = vld [vmem:[#allocation11 + $0x2c] sm:$0xf]
        %v720 = vld [vmem:[#allocation11 + $0x30] sm:$0xf]
        %v721 = vld [vmem:[#allocation11 + $0x34] sm:$0xf]
        %v722 = vld [vmem:[#allocation11 + $0x38] sm:$0xf]
        %v723 = vld [vmem:[#allocation11 + $0x3c] sm:$0xf]
        %v740 = vunpack.c.l.b16 %v708
        %v741 = vunpack.c.l.b16 %v709
        %v742 = vunpack.c.l.b16 %v710
        %v743 = vunpack.c.l.b16 %v711
        %v744 = vunpack.c.l.b16 %v712
        %v745 = vunpack.c.l.b16 %v713
        %v746 = vunpack.c.l.b16 %v714
        %v747 = vunpack.c.l.b16 %v715
        %v748 = vunpack.c.l.b16 %v716
        %v749 = vunpack.c.l.b16 %v717
        %v750 = vunpack.c.l.b16 %v718
        %v751 = vunpack.c.l.b16 %v719
        %v752 = vunpack.c.l.b16 %v720
        %v753 = vunpack.c.l.b16 %v721
        %v754 = vunpack.c.l.b16 %v722
        %v755 = vunpack.c.l.b16 %v723
        %v756 = vpack.c.b16 %v741, %v740
        %v757 = vpack.c.b16 %v743, %v742
        %v758 = vpack.c.b16 %v745, %v744
        %v759 = vpack.c.b16 %v747, %v746
        %v760 = vpack.c.b16 %v749, %v748
        %v761 = vpack.c.b16 %v751, %v750
        %v762 = vpack.c.b16 %v753, %v752
        %v763 = vpack.c.b16 %v755, %v754
        %772 = vmatprep.subr.bf16.mxu0 0
        %773 = vmatpush1.bf16.msra.mxu0 %v763
        %774 = vmatprep.subr.bf16.mxu0 0
        %775 = vmatpush1.bf16.msra.mxu0 %v762
        %776 = vmatprep.subr.bf16.mxu0 0
        %777 = vmatpush1.bf16.msra.mxu0 %v761
        %778 = vmatprep.subr.bf16.mxu0 0
        %779 = vmatpush1.bf16.msra.mxu0 %v760
        %780 = vmatprep.subr.bf16.mxu0 0
        %781 = vmatpush1.bf16.msra.mxu0 %v759
        %782 = vmatprep.subr.bf16.mxu0 0
        %783 = vmatpush1.bf16.msra.mxu0 %v758
        %784 = vmatprep.subr.bf16.mxu0 0
        %785 = vmatpush1.bf16.msra.mxu0 %v757
        %786 = vmatprep.subr.bf16.mxu0 0
        %787 = vmatpush1.bf16.msra.mxu0 %v756
        %788 = vmatprep.subr.bf16.mxu0 0
        %789 = vmatpush2.bf16.msra.mxu0 0
        %790 = vmatprep.subr.bf16.mxu0 0
        %791 = vmatpush2.bf16.msra.mxu0 0
        %792 = vmatprep.subr.bf16.mxu0 0
        %793 = vmatpush2.bf16.msra.mxu0 0
        %794 = vmatprep.subr.bf16.mxu0 0
        %795 = vmatpush2.bf16.msra.mxu0 0
        %796 = vmatprep.subr.bf16.mxu0 0
        %797 = vmatpush2.bf16.msra.mxu0 0
        %798 = vmatprep.subr.bf16.mxu0 0
        %799 = vmatpush2.bf16.msra.mxu0 0
        %800 = vmatprep.subr.bf16.mxu0 0
        %801 = vmatpush2.bf16.msra.mxu0 0
        %802 = vmatprep.subr.bf16.mxu0 0
        %803 = vmatpush2.bf16.msra.mxu0 0
        %804 = vmatprep.mubr.bf16.mxu0 0
        %805 = vmatmul.mubr.bf16.gmra.mxu0 %v707
        %v806 = vpop.f32.mrf.mxu0
        %v807 = vadd.f32 0.0, %v806
        %v808 = vpop.f32.mrf.mxu0
        %v809 = vpop.f32.mrf.mxu0
        %v810 = vpop.f32.mrf.mxu0
        %811 = vdwg.mxu0
        %813 = vrot.lane.b32.xlu0 %v601, 96
        %v814 = vpop.permute.xlu0 %813
        %816 = vrot.lane.b32.xlu0 %v601, 64
        %v817 = vpop.permute.xlu0 %816
        %819 = vrot.lane.b32.xlu0 %v601, 32
        %v820 = vpop.permute.xlu0 %819
        %v822 = vcombine.low %v601, %v817
        %v823 = vcombine.high %v601, %v817
        %v825 = vunpack.c.l.s4 1983009808
        %v826 = vunpack.c.0.s8 %v825
        %v827 = vlaneseq
        %v828 = vshrl.u32 %v827, 7
        %v829 = vsub.s32 %v826, %v828
        %v830 = vrot.slane %v822, %v829
        %v832 = vunpack.c.l.s4 1983009808
        %v833 = vunpack.c.0.s8 %v832
        %v834 = vlaneseq
        %v835 = vshrl.u32 %v834, 7
        %v836 = vsub.s32 %v833, %v835
        %v837 = vrot.slane %v823, %v836
        %v838 = vcombine.low %v814, %v820
        %v839 = vcombine.high %v814, %v820
        %v841 = vunpack.c.l.s4 1983009808
        %v842 = vunpack.c.0.s8 %v841
        %v843 = vlaneseq
        %v844 = vshrl.u32 %v843, 7
        %v845 = vsub.s32 %v842, %v844
        %v846 = vrot.slane %v838, %v845
        %v848 = vunpack.c.l.s4 1983009808
        %v849 = vunpack.c.0.s8 %v848
        %v850 = vlaneseq
        %v851 = vshrl.u32 %v850, 7
        %v852 = vsub.s32 %v849, %v851
        %v853 = vrot.slane %v839, %v852
        %v854 = vcombine.low %v830, %v846
        %v855 = vcombine.high %v830, %v846
        %v857 = vunpack.c.l.s4 1934713408
        %v858 = vunpack.c.0.s8 %v857
        %v859 = vlaneseq
        %v860 = vshrl.u32 %v859, 7
        %v861 = vsub.s32 %v858, %v860
        %v862 = vrot.slane %v854, %v861
        %v864 = vunpack.c.l.s4 1934713408
        %v865 = vunpack.c.0.s8 %v864
        %v866 = vlaneseq
        %v867 = vshrl.u32 %v866, 7
        %v868 = vsub.s32 %v865, %v867
        %v869 = vrot.slane %v855, %v868
        %v870 = vcombine.low %v837, %v853
        %v871 = vcombine.high %v837, %v853
        %v873 = vunpack.c.l.s4 1934713408
        %v874 = vunpack.c.0.s8 %v873
        %v875 = vlaneseq
        %v876 = vshrl.u32 %v875, 7
        %v877 = vsub.s32 %v874, %v876
        %v878 = vrot.slane %v870, %v877
        %v880 = vunpack.c.l.s4 1934713408
        %v881 = vunpack.c.0.s8 %v880
        %v882 = vlaneseq
        %v883 = vshrl.u32 %v882, 7
        %v884 = vsub.s32 %v881, %v883
        %v885 = vrot.slane %v871, %v884
        %v886 = vcombine.high %v862, 0.0
        %v887 = vcombine.high %v869, 0.0
        %v888 = vcombine.high %v878, 0.0
        %v889 = vcombine.high %v885, 0.0
        %v890 = vcombine.low %v862, %v869
        %v892 = vunpack.c.l.s4 1983009808
        %v893 = vunpack.c.0.s8 %v892
        %v894 = vlaneseq
        %v895 = vshrl.u32 %v894, 7
        %v896 = vsub.s32 %v893, %v895
        %v897 = vrot.slane %v890, %v896
        %v898 = vcombine.low %v886, %v887
        %v900 = vunpack.c.l.s4 1983009808
        %v901 = vunpack.c.0.s8 %v900
        %v902 = vlaneseq
        %v903 = vshrl.u32 %v902, 7
        %v904 = vsub.s32 %v901, %v903
        %v905 = vrot.slane %v898, %v904
        %v906 = vcombine.low %v878, %v885
        %v908 = vunpack.c.l.s4 1983009808
        %v909 = vunpack.c.0.s8 %v908
        %v910 = vlaneseq
        %v911 = vshrl.u32 %v910, 7
        %v912 = vsub.s32 %v909, %v911
        %v913 = vrot.slane %v906, %v912
        %v914 = vcombine.low %v888, %v889
        %v916 = vunpack.c.l.s4 1983009808
        %v917 = vunpack.c.0.s8 %v916
        %v918 = vlaneseq
        %v919 = vshrl.u32 %v918, 7
        %v920 = vsub.s32 %v917, %v919
        %v921 = vrot.slane %v914, %v920
        %v922 = vcombine.low %v897, %v905
        %v923 = vcombine.high %v897, %v905
        %v925 = vunpack.c.l.s4 1934713408
        %v926 = vunpack.c.0.s8 %v925
        %v927 = vlaneseq
        %v928 = vshrl.u32 %v927, 7
        %v929 = vsub.s32 %v926, %v928
        %v930 = vrot.slane %v922, %v929
        %v932 = vunpack.c.l.s4 1934713408
        %v933 = vunpack.c.0.s8 %v932
        %v934 = vlaneseq
        %v935 = vshrl.u32 %v934, 7
        %v936 = vsub.s32 %v933, %v935
        %v937 = vrot.slane %v923, %v936
        %v938 = vcombine.low %v913, %v921
        %v939 = vcombine.high %v913, %v921
        %v941 = vunpack.c.l.s4 1934713408
        %v942 = vunpack.c.0.s8 %v941
        %v943 = vlaneseq
        %v944 = vshrl.u32 %v943, 7
        %v945 = vsub.s32 %v942, %v944
        %v946 = vrot.slane %v938, %v945
        %v948 = vunpack.c.l.s4 1934713408
        %v949 = vunpack.c.0.s8 %v948
        %v950 = vlaneseq
        %v951 = vshrl.u32 %v950, 7
        %v952 = vsub.s32 %v949, %v951
        %v953 = vrot.slane %v939, %v952
        %v954 = vcombine.low %v930, %v946
        %v955 = vcombine.high %v930, %v946
        %v956 = vcombine.low %v937, %v953
        %v957 = vcombine.high %v937, %v953
        %v958 = vpack.c.bf16 %v954, %v954
        %v959 = vpack.c.bf16 %v955, %v955
        %v960 = vpack.c.bf16 %v956, %v956
        %v961 = vpack.c.bf16 %v957, %v957
        %963 = vrot.lane.b32.xlu0 %v702, 96
        %v964 = vpop.permute.xlu0 %963
        %966 = vrot.lane.b32.xlu0 %v702, 64
        %v967 = vpop.permute.xlu0 %966
        %969 = vrot.lane.b32.xlu0 %v702, 32
        %v970 = vpop.permute.xlu0 %969
        %v972 = vcombine.low %v702, %v967
        %v973 = vcombine.high %v702, %v967
        %v975 = vunpack.c.l.s4 1983009808
        %v976 = vunpack.c.0.s8 %v975
        %v977 = vlaneseq
        %v978 = vshrl.u32 %v977, 7
        %v979 = vsub.s32 %v976, %v978
        %v980 = vrot.slane %v972, %v979
        %v982 = vunpack.c.l.s4 1983009808
        %v983 = vunpack.c.0.s8 %v982
        %v984 = vlaneseq
        %v985 = vshrl.u32 %v984, 7
        %v986 = vsub.s32 %v983, %v985
        %v987 = vrot.slane %v973, %v986
        %v988 = vcombine.low %v964, %v970
        %v989 = vcombine.high %v964, %v970
        %v991 = vunpack.c.l.s4 1983009808
        %v992 = vunpack.c.0.s8 %v991
        %v993 = vlaneseq
        %v994 = vshrl.u32 %v993, 7
        %v995 = vsub.s32 %v992, %v994
        %v996 = vrot.slane %v988, %v995
        %v998 = vunpack.c.l.s4 1983009808
        %v999 = vunpack.c.0.s8 %v998
        %v1000 = vlaneseq
        %v1001 = vshrl.u32 %v1000, 7
        %v1002 = vsub.s32 %v999, %v1001
        %v1003 = vrot.slane %v989, %v1002
        %v1004 = vcombine.low %v980, %v996
        %v1005 = vcombine.high %v980, %v996
        %v1007 = vunpack.c.l.s4 1934713408
        %v1008 = vunpack.c.0.s8 %v1007
        %v1009 = vlaneseq
        %v1010 = vshrl.u32 %v1009, 7
        %v1011 = vsub.s32 %v1008, %v1010
        %v1012 = vrot.slane %v1004, %v1011
        %v1014 = vunpack.c.l.s4 1934713408
        %v1015 = vunpack.c.0.s8 %v1014
        %v1016 = vlaneseq
        %v1017 = vshrl.u32 %v1016, 7
        %v1018 = vsub.s32 %v1015, %v1017
        %v1019 = vrot.slane %v1005, %v1018
        %v1020 = vcombine.low %v987, %v1003
        %v1021 = vcombine.high %v987, %v1003
        %v1023 = vunpack.c.l.s4 1934713408
        %v1024 = vunpack.c.0.s8 %v1023
        %v1025 = vlaneseq
        %v1026 = vshrl.u32 %v1025, 7
        %v1027 = vsub.s32 %v1024, %v1026
        %v1028 = vrot.slane %v1020, %v1027
        %v1030 = vunpack.c.l.s4 1934713408
        %v1031 = vunpack.c.0.s8 %v1030
        %v1032 = vlaneseq
        %v1033 = vshrl.u32 %v1032, 7
        %v1034 = vsub.s32 %v1031, %v1033
        %v1035 = vrot.slane %v1021, %v1034
        %v1036 = vcombine.high %v1012, 0.0
        %v1037 = vcombine.high %v1019, 0.0
        %v1038 = vcombine.high %v1028, 0.0
        %v1039 = vcombine.high %v1035, 0.0
        %v1040 = vcombine.low %v1012, %v1019
        %v1042 = vunpack.c.l.s4 1983009808
        %v1043 = vunpack.c.0.s8 %v1042
        %v1044 = vlaneseq
        %v1045 = vshrl.u32 %v1044, 7
        %v1046 = vsub.s32 %v1043, %v1045
        %v1047 = vrot.slane %v1040, %v1046
        %v1048 = vcombine.low %v1036, %v1037
        %v1050 = vunpack.c.l.s4 1983009808
        %v1051 = vunpack.c.0.s8 %v1050
        %v1052 = vlaneseq
        %v1053 = vshrl.u32 %v1052, 7
        %v1054 = vsub.s32 %v1051, %v1053
        %v1055 = vrot.slane %v1048, %v1054
        %v1056 = vcombine.low %v1028, %v1035
        %v1058 = vunpack.c.l.s4 1983009808
        %v1059 = vunpack.c.0.s8 %v1058
        %v1060 = vlaneseq
        %v1061 = vshrl.u32 %v1060, 7
        %v1062 = vsub.s32 %v1059, %v1061
        %v1063 = vrot.slane %v1056, %v1062
        %v1064 = vcombine.low %v1038, %v1039
        %v1066 = vunpack.c.l.s4 1983009808
        %v1067 = vunpack.c.0.s8 %v1066
        %v1068 = vlaneseq
        %v1069 = vshrl.u32 %v1068, 7
        %v1070 = vsub.s32 %v1067, %v1069
        %v1071 = vrot.slane %v1064, %v1070
        %v1072 = vcombine.low %v1047, %v1055
        %v1073 = vcombine.high %v1047, %v1055
        %v1075 = vunpack.c.l.s4 1934713408
        %v1076 = vunpack.c.0.s8 %v1075
        %v1077 = vlaneseq
        %v1078 = vshrl.u32 %v1077, 7
        %v1079 = vsub.s32 %v1076, %v1078
        %v1080 = vrot.slane %v1072, %v1079
        %v1082 = vunpack.c.l.s4 1934713408
        %v1083 = vunpack.c.0.s8 %v1082
        %v1084 = vlaneseq
        %v1085 = vshrl.u32 %v1084, 7
        %v1086 = vsub.s32 %v1083, %v1085
        %v1087 = vrot.slane %v1073, %v1086
        %v1088 = vcombine.low %v1063, %v1071
        %v1089 = vcombine.high %v1063, %v1071
        %v1091 = vunpack.c.l.s4 1934713408
        %v1092 = vunpack.c.0.s8 %v1091
        %v1093 = vlaneseq
        %v1094 = vshrl.u32 %v1093, 7
        %v1095 = vsub.s32 %v1092, %v1094
        %v1096 = vrot.slane %v1088, %v1095
        %v1098 = vunpack.c.l.s4 1934713408
        %v1099 = vunpack.c.0.s8 %v1098
        %v1100 = vlaneseq
        %v1101 = vshrl.u32 %v1100, 7
        %v1102 = vsub.s32 %v1099, %v1101
        %v1103 = vrot.slane %v1089, %v1102
        %v1104 = vcombine.low %v1080, %v1096
        %v1105 = vcombine.high %v1080, %v1096
        %v1106 = vcombine.low %v1087, %v1103
        %v1107 = vcombine.high %v1087, %v1103
        %v1108 = vpack.c.bf16 %v1104, %v1104
        %v1109 = vpack.c.bf16 %v1105, %v1105
        %v1110 = vpack.c.bf16 %v1106, %v1106
        %v1111 = vpack.c.bf16 %v1107, %v1107
        %1113 = vrot.lane.b32.xlu0 %v807, 96
        %v1114 = vpop.permute.xlu0 %1113
        %1116 = vrot.lane.b32.xlu0 %v807, 64
        %v1117 = vpop.permute.xlu0 %1116
        %1119 = vrot.lane.b32.xlu0 %v807, 32
        %v1120 = vpop.permute.xlu0 %1119
        %v1122 = vcombine.low %v807, %v1117
        %v1123 = vcombine.high %v807, %v1117
        %v1125 = vunpack.c.l.s4 1983009808
        %v1126 = vunpack.c.0.s8 %v1125
        %v1127 = vlaneseq
        %v1128 = vshrl.u32 %v1127, 7
        %v1129 = vsub.s32 %v1126, %v1128
        %v1130 = vrot.slane %v1122, %v1129
        %v1132 = vunpack.c.l.s4 1983009808
        %v1133 = vunpack.c.0.s8 %v1132
        %v1134 = vlaneseq
        %v1135 = vshrl.u32 %v1134, 7
        %v1136 = vsub.s32 %v1133, %v1135
        %v1137 = vrot.slane %v1123, %v1136
        %v1138 = vcombine.low %v1114, %v1120
        %v1139 = vcombine.high %v1114, %v1120
        %v1141 = vunpack.c.l.s4 1983009808
        %v1142 = vunpack.c.0.s8 %v1141
        %v1143 = vlaneseq
        %v1144 = vshrl.u32 %v1143, 7
        %v1145 = vsub.s32 %v1142, %v1144
        %v1146 = vrot.slane %v1138, %v1145
        %v1148 = vunpack.c.l.s4 1983009808
        %v1149 = vunpack.c.0.s8 %v1148
        %v1150 = vlaneseq
        %v1151 = vshrl.u32 %v1150, 7
        %v1152 = vsub.s32 %v1149, %v1151
        %v1153 = vrot.slane %v1139, %v1152
        %v1154 = vcombine.low %v1130, %v1146
        %v1155 = vcombine.high %v1130, %v1146
        %v1157 = vunpack.c.l.s4 1934713408
        %v1158 = vunpack.c.0.s8 %v1157
        %v1159 = vlaneseq
        %v1160 = vshrl.u32 %v1159, 7
        %v1161 = vsub.s32 %v1158, %v1160
        %v1162 = vrot.slane %v1154, %v1161
        %v1164 = vunpack.c.l.s4 1934713408
        %v1165 = vunpack.c.0.s8 %v1164
        %v1166 = vlaneseq
        %v1167 = vshrl.u32 %v1166, 7
        %v1168 = vsub.s32 %v1165, %v1167
        %v1169 = vrot.slane %v1155, %v1168
        %v1170 = vcombine.low %v1137, %v1153
        %v1171 = vcombine.high %v1137, %v1153
        %v1173 = vunpack.c.l.s4 1934713408
        %v1174 = vunpack.c.0.s8 %v1173
        %v1175 = vlaneseq
        %v1176 = vshrl.u32 %v1175, 7
        %v1177 = vsub.s32 %v1174, %v1176
        %v1178 = vrot.slane %v1170, %v1177
        %v1180 = vunpack.c.l.s4 1934713408
        %v1181 = vunpack.c.0.s8 %v1180
        %v1182 = vlaneseq
        %v1183 = vshrl.u32 %v1182, 7
        %v1184 = vsub.s32 %v1181, %v1183
        %v1185 = vrot.slane %v1171, %v1184
        %v1186 = vcombine.high %v1162, 0.0
        %v1187 = vcombine.high %v1169, 0.0
        %v1188 = vcombine.high %v1178, 0.0
        %v1189 = vcombine.high %v1185, 0.0
        %v1190 = vcombine.low %v1162, %v1169
        %v1192 = vunpack.c.l.s4 1983009808
        %v1193 = vunpack.c.0.s8 %v1192
        %v1194 = vlaneseq
        %v1195 = vshrl.u32 %v1194, 7
        %v1196 = vsub.s32 %v1193, %v1195
        %v1197 = vrot.slane %v1190, %v1196
        %v1198 = vcombine.low %v1186, %v1187
        %v1200 = vunpack.c.l.s4 1983009808
        %v1201 = vunpack.c.0.s8 %v1200
        %v1202 = vlaneseq
        %v1203 = vshrl.u32 %v1202, 7
        %v1204 = vsub.s32 %v1201, %v1203
        %v1205 = vrot.slane %v1198, %v1204
        %v1206 = vcombine.low %v1178, %v1185
        %v1208 = vunpack.c.l.s4 1983009808
        %v1209 = vunpack.c.0.s8 %v1208
        %v1210 = vlaneseq
        %v1211 = vshrl.u32 %v1210, 7
        %v1212 = vsub.s32 %v1209, %v1211
        %v1213 = vrot.slane %v1206, %v1212
        %v1214 = vcombine.low %v1188, %v1189
        %v1216 = vunpack.c.l.s4 1983009808
        %v1217 = vunpack.c.0.s8 %v1216
        %v1218 = vlaneseq
        %v1219 = vshrl.u32 %v1218, 7
        %v1220 = vsub.s32 %v1217, %v1219
        %v1221 = vrot.slane %v1214, %v1220
        %v1222 = vcombine.low %v1197, %v1205
        %v1223 = vcombine.high %v1197, %v1205
        %v1225 = vunpack.c.l.s4 1934713408
        %v1226 = vunpack.c.0.s8 %v1225
        %v1227 = vlaneseq
        %v1228 = vshrl.u32 %v1227, 7
        %v1229 = vsub.s32 %v1226, %v1228
        %v1230 = vrot.slane %v1222, %v1229
        %v1232 = vunpack.c.l.s4 1934713408
        %v1233 = vunpack.c.0.s8 %v1232
        %v1234 = vlaneseq
        %v1235 = vshrl.u32 %v1234, 7
        %v1236 = vsub.s32 %v1233, %v1235
        %v1237 = vrot.slane %v1223, %v1236
        %v1238 = vcombine.low %v1213, %v1221
        %v1239 = vcombine.high %v1213, %v1221
        %v1241 = vunpack.c.l.s4 1934713408
        %v1242 = vunpack.c.0.s8 %v1241
        %v1243 = vlaneseq
        %v1244 = vshrl.u32 %v1243, 7
        %v1245 = vsub.s32 %v1242, %v1244
        %v1246 = vrot.slane %v1238, %v1245
        %v1248 = vunpack.c.l.s4 1934713408
        %v1249 = vunpack.c.0.s8 %v1248
        %v1250 = vlaneseq
        %v1251 = vshrl.u32 %v1250, 7
        %v1252 = vsub.s32 %v1249, %v1251
        %v1253 = vrot.slane %v1239, %v1252
        %v1254 = vcombine.low %v1230, %v1246
        %v1255 = vcombine.high %v1230, %v1246
        %v1256 = vcombine.low %v1237, %v1253
        %v1257 = vcombine.high %v1237, %v1253
        %v1258 = vpack.c.bf16 %v1254, %v1254
        %v1259 = vpack.c.bf16 %v1255, %v1255
        %v1260 = vpack.c.bf16 %v1256, %v1256
        %v1261 = vpack.c.bf16 %v1257, %v1257
        %vm1262 = vcmask 261120
        %v1264 = vsel %vm1262, %v958, 0
        %v1267 = vsel %vm1262, %v1108, 0
        %1269 = vmatprep.subr.bf16.mxu0 0
        %1270 = vmatpush1.bf16.xpose.msra.mxu0 0
        %1271 = vmatprep.subr.bf16.mxu0 0
        %1272 = vmatpush1.bf16.xpose.msra.mxu0 0
        %1273 = vmatprep.subr.bf16.mxu0 0
        %1274 = vmatpush1.bf16.xpose.msra.mxu0 0
        %1275 = vmatprep.subr.bf16.mxu0 0
        %1276 = vmatpush1.bf16.xpose.msra.mxu0 0
        %1277 = vmatprep.subr.bf16.mxu0 0
        %1278 = vmatpush1.bf16.xpose.msra.mxu0 0
        %1279 = vmatprep.subr.bf16.mxu0 0
        %1280 = vmatpush1.bf16.xpose.msra.mxu0 0
        %1281 = vmatprep.subr.bf16.mxu0 0
        %1282 = vmatpush1.bf16.xpose.msra.mxu0 0
        %1283 = vmatprep.subr.bf16.mxu0 0
        %1284 = vmatpush1.bf16.xpose.msra.mxu0 %v1267
        %1285 = vmatprep.subr.bf16.mxu0 0
        %1286 = vmatpush2.bf16.xpose.msra.mxu0 0
        %1287 = vmatprep.subr.bf16.mxu0 0
        %1288 = vmatpush2.bf16.xpose.msra.mxu0 0
        %1289 = vmatprep.subr.bf16.mxu0 0
        %1290 = vmatpush2.bf16.xpose.msra.mxu0 0
        %1291 = vmatprep.subr.bf16.mxu0 0
        %1292 = vmatpush2.bf16.xpose.msra.mxu0 0
        %1293 = vmatprep.subr.bf16.mxu0 0
        %1294 = vmatpush2.bf16.xpose.msra.mxu0 0
        %1295 = vmatprep.subr.bf16.mxu0 0
        %1296 = vmatpush2.bf16.xpose.msra.mxu0 0
        %1297 = vmatprep.subr.bf16.mxu0 0
        %1298 = vmatpush2.bf16.xpose.msra.mxu0 0
        %1299 = vmatprep.subr.bf16.mxu0 0
        %1300 = vmatpush2.bf16.xpose.msra.mxu0 0
        %1301 = vmatprep.mubr.bf16.mxu0 0
        %1302 = vmatmul.mubr.bf16.gmra.mxu0 %v1264
        %v1303 = vpop.f32.mrf.mxu0
        %v1304 = vadd.f32 0.0, %v1303
        %v1305 = vpop.f32.mrf.mxu0
        %v1306 = vpop.f32.mrf.mxu0
        %v1307 = vpop.f32.mrf.mxu0
        %1308 = vdwg.mxu0
        %v1310 = vsel %vm1262, %v959, 0
        %v1313 = vsel %vm1262, %v1109, 0
        %1315 = vmatprep.subr.bf16.mxu0 0
        %1316 = vmatpush1.bf16.xpose.msra.mxu0 0
        %1317 = vmatprep.subr.bf16.mxu0 0
        %1318 = vmatpush1.bf16.xpose.msra.mxu0 0
        %1319 = vmatprep.subr.bf16.mxu0 0
        %1320 = vmatpush1.bf16.xpose.msra.mxu0 0
        %1321 = vmatprep.subr.bf16.mxu0 0
        %1322 = vmatpush1.bf16.xpose.msra.mxu0 0
        %1323 = vmatprep.subr.bf16.mxu0 0
        %1324 = vmatpush1.bf16.xpose.msra.mxu0 0
        %1325 = vmatprep.subr.bf16.mxu0 0
        %1326 = vmatpush1.bf16.xpose.msra.mxu0 0
        %1327 = vmatprep.subr.bf16.mxu0 0
        %1328 = vmatpush1.bf16.xpose.msra.mxu0 0
        %1329 = vmatprep.subr.bf16.mxu0 0
        %1330 = vmatpush1.bf16.xpose.msra.mxu0 %v1313
        %1331 = vmatprep.subr.bf16.mxu0 0
        %1332 = vmatpush2.bf16.xpose.msra.mxu0 0
        %1333 = vmatprep.subr.bf16.mxu0 0
        %1334 = vmatpush2.bf16.xpose.msra.mxu0 0
        %1335 = vmatprep.subr.bf16.mxu0 0
        %1336 = vmatpush2.bf16.xpose.msra.mxu0 0
        %1337 = vmatprep.subr.bf16.mxu0 0
        %1338 = vmatpush2.bf16.xpose.msra.mxu0 0
        %1339 = vmatprep.subr.bf16.mxu0 0
        %1340 = vmatpush2.bf16.xpose.msra.mxu0 0
        %1341 = vmatprep.subr.bf16.mxu0 0
        %1342 = vmatpush2.bf16.xpose.msra.mxu0 0
        %1343 = vmatprep.subr.bf16.mxu0 0
        %1344 = vmatpush2.bf16.xpose.msra.mxu0 0
        %1345 = vmatprep.subr.bf16.mxu0 0
        %1346 = vmatpush2.bf16.xpose.msra.mxu0 0
        %1347 = vmatprep.mubr.bf16.mxu0 0
        %1348 = vmatmul.mubr.bf16.gmra.mxu0 %v1310
        %v1349 = vpop.f32.mrf.mxu0
        %v1350 = vadd.f32 0.0, %v1349
        %v1351 = vpop.f32.mrf.mxu0
        %v1352 = vpop.f32.mrf.mxu0
        %v1353 = vpop.f32.mrf.mxu0
        %1354 = vdwg.mxu0
        %v1356 = vsel %vm1262, %v960, 0
        %v1359 = vsel %vm1262, %v1110, 0
        %1361 = vmatprep.subr.bf16.mxu0 0
        %1362 = vmatpush1.bf16.xpose.msra.mxu0 0
        %1363 = vmatprep.subr.bf16.mxu0 0
        %1364 = vmatpush1.bf16.xpose.msra.mxu0 0
        %1365 = vmatprep.subr.bf16.mxu0 0
        %1366 = vmatpush1.bf16.xpose.msra.mxu0 0
        %1367 = vmatprep.subr.bf16.mxu0 0
        %1368 = vmatpush1.bf16.xpose.msra.mxu0 0
        %1369 = vmatprep.subr.bf16.mxu0 0
        %1370 = vmatpush1.bf16.xpose.msra.mxu0 0
        %1371 = vmatprep.subr.bf16.mxu0 0
        %1372 = vmatpush1.bf16.xpose.msra.mxu0 0
        %1373 = vmatprep.subr.bf16.mxu0 0
        %1374 = vmatpush1.bf16.xpose.msra.mxu0 0
        %1375 = vmatprep.subr.bf16.mxu0 0
        %1376 = vmatpush1.bf16.xpose.msra.mxu0 %v1359
        %1377 = vmatprep.subr.bf16.mxu0 0
        %1378 = vmatpush2.bf16.xpose.msra.mxu0 0
        %1379 = vmatprep.subr.bf16.mxu0 0
        %1380 = vmatpush2.bf16.xpose.msra.mxu0 0
        %1381 = vmatprep.subr.bf16.mxu0 0
        %1382 = vmatpush2.bf16.xpose.msra.mxu0 0
        %1383 = vmatprep.subr.bf16.mxu0 0
        %1384 = vmatpush2.bf16.xpose.msra.mxu0 0
        %1385 = vmatprep.subr.bf16.mxu0 0
        %1386 = vmatpush2.bf16.xpose.msra.mxu0 0
        %1387 = vmatprep.subr.bf16.mxu0 0
        %1388 = vmatpush2.bf16.xpose.msra.mxu0 0
        %1389 = vmatprep.subr.bf16.mxu0 0
        %1390 = vmatpush2.bf16.xpose.msra.mxu0 0
        %1391 = vmatprep.subr.bf16.mxu0 0
        %1392 = vmatpush2.bf16.xpose.msra.mxu0 0
        %1393 = vmatprep.mubr.bf16.mxu0 0
        %1394 = vmatmul.mubr.bf16.gmra.mxu0 %v1356
        %v1395 = vpop.f32.mrf.mxu0
        %v1396 = vadd.f32 0.0, %v1395
        %v1397 = vpop.f32.mrf.mxu0
        %v1398 = vpop.f32.mrf.mxu0
        %v1399 = vpop.f32.mrf.mxu0
        %1400 = vdwg.mxu0
        %v1402 = vsel %vm1262, %v961, 0
        %v1405 = vsel %vm1262, %v1111, 0
        %1407 = vmatprep.subr.bf16.mxu0 0
        %1408 = vmatpush1.bf16.xpose.msra.mxu0 0
        %1409 = vmatprep.subr.bf16.mxu0 0
        %1410 = vmatpush1.bf16.xpose.msra.mxu0 0
        %1411 = vmatprep.subr.bf16.mxu0 0
        %1412 = vmatpush1.bf16.xpose.msra.mxu0 0
        %1413 = vmatprep.subr.bf16.mxu0 0
        %1414 = vmatpush1.bf16.xpose.msra.mxu0 0
        %1415 = vmatprep.subr.bf16.mxu0 0
        %1416 = vmatpush1.bf16.xpose.msra.mxu0 0
        %1417 = vmatprep.subr.bf16.mxu0 0
        %1418 = vmatpush1.bf16.xpose.msra.mxu0 0
        %1419 = vmatprep.subr.bf16.mxu0 0
        %1420 = vmatpush1.bf16.xpose.msra.mxu0 0
        %1421 = vmatprep.subr.bf16.mxu0 0
        %1422 = vmatpush1.bf16.xpose.msra.mxu0 %v1405
        %1423 = vmatprep.subr.bf16.mxu0 0
        %1424 = vmatpush2.bf16.xpose.msra.mxu0 0
        %1425 = vmatprep.subr.bf16.mxu0 0
        %1426 = vmatpush2.bf16.xpose.msra.mxu0 0
        %1427 = vmatprep.subr.bf16.mxu0 0
        %1428 = vmatpush2.bf16.xpose.msra.mxu0 0
        %1429 = vmatprep.subr.bf16.mxu0 0
        %1430 = vmatpush2.bf16.xpose.msra.mxu0 0
        %1431 = vmatprep.subr.bf16.mxu0 0
        %1432 = vmatpush2.bf16.xpose.msra.mxu0 0
        %1433 = vmatprep.subr.bf16.mxu0 0
        %1434 = vmatpush2.bf16.xpose.msra.mxu0 0
        %1435 = vmatprep.subr.bf16.mxu0 0
        %1436 = vmatpush2.bf16.xpose.msra.mxu0 0
        %1437 = vmatprep.subr.bf16.mxu0 0
        %1438 = vmatpush2.bf16.xpose.msra.mxu0 0
        %1439 = vmatprep.mubr.bf16.mxu0 0
        %1440 = vmatmul.mubr.bf16.gmra.mxu0 %v1402
        %v1441 = vpop.f32.mrf.mxu0
        %v1442 = vadd.f32 0.0, %v1441
        %v1443 = vpop.f32.mrf.mxu0
        %v1444 = vpop.f32.mrf.mxu0
        %v1445 = vpop.f32.mrf.mxu0
        %1446 = vdwg.mxu0
        %vm1447 = vcmask 64512
        %v1448 = vsel %vm1447, %v1304, -inf
        %1449 = vmax.xlane.f32.xlu0 %v1448
        %v1450 = vpop.xlane.xlu0 %1449
        %v1451 = vsel %vm1447, %v1350, -inf
        %1452 = vmax.xlane.f32.xlu0 %v1451
        %v1453 = vpop.xlane.xlu0 %1452
        %v1454 = vsel %vm1447, %v1396, -inf
        %1455 = vmax.xlane.f32.xlu0 %v1454
        %v1456 = vpop.xlane.xlu0 %1455
        %v1457 = vsel %vm1447, %v1442, -inf
        %1458 = vmax.xlane.f32.xlu0 %v1457
        %v1459 = vpop.xlane.xlu0 %1458
        %v1460 = vsub.f32 %v1304, %v1450
        %v1461 = vsub.f32 %v1350, %v1453
        %v1462 = vsub.f32 %v1396, %v1456
        %v1463 = vsub.f32 %v1442, %v1459
        %v1464 = vmul.f32 %v1460, 1.442695
        %v1465 = vpow.pop %v1464
        %v1466 = vmul.f32 %v1461, 1.442695
        %v1467 = vpow.pop %v1466
        %v1468 = vmul.f32 %v1462, 1.442695
        %v1469 = vpow.pop %v1468
        %v1470 = vmul.f32 %v1463, 1.442695
        %v1471 = vpow.pop %v1470
        %v1472 = vsel %vm1447, %v1465, 0.0
        %1473 = vadd.xlane.f32.xlu0 %v1472
        %v1474 = vpop.xlane.xlu0 %1473
        %v1475 = vsel %vm1447, %v1467, 0.0
        %1476 = vadd.xlane.f32.xlu0 %v1475
        %v1477 = vpop.xlane.xlu0 %1476
        %v1478 = vsel %vm1447, %v1469, 0.0
        %1479 = vadd.xlane.f32.xlu0 %v1478
        %v1480 = vpop.xlane.xlu0 %1479
        %v1481 = vsel %vm1447, %v1471, 0.0
        %1482 = vadd.xlane.f32.xlu0 %v1481
        %v1483 = vpop.xlane.xlu0 %1482
        %v1484 = vrcp.pop %v1474
        %v1485 = vrcp.pop %v1477
        %v1486 = vrcp.pop %v1480
        %v1487 = vrcp.pop %v1483
        %v1488 = vpack.c.bf16 %v1465, %v1465
        %v1489 = vpack.c.bf16 %v1467, %v1467
        %v1490 = vpack.c.bf16 %v1469, %v1469
        %v1491 = vpack.c.bf16 %v1471, %v1471
        %v1493 = vsel %vm1447, %v1488, 0
        %vm1495 = vcmask 1043456
        %v1497 = vsel %vm1495, %v1258, 0
        %1499 = vmatprep.subr.bf16.mxu0 0
        %1500 = vmatpush1.bf16.msra.mxu0 0
        %1501 = vmatprep.subr.bf16.mxu0 0
        %1502 = vmatpush1.bf16.msra.mxu0 0
        %1503 = vmatprep.subr.bf16.mxu0 0
        %1504 = vmatpush1.bf16.msra.mxu0 0
        %1505 = vmatprep.subr.bf16.mxu0 0
        %1506 = vmatpush1.bf16.msra.mxu0 0
        %1507 = vmatprep.subr.bf16.mxu0 0
        %1508 = vmatpush1.bf16.msra.mxu0 0
        %1509 = vmatprep.subr.bf16.mxu0 0
        %1510 = vmatpush1.bf16.msra.mxu0 0
        %1511 = vmatprep.subr.bf16.mxu0 0
        %1512 = vmatpush1.bf16.msra.mxu0 0
        %1513 = vmatprep.subr.bf16.mxu0 0
        %1514 = vmatpush1.bf16.msra.mxu0 %v1497
        %1515 = vmatprep.subr.bf16.mxu0 0
        %1516 = vmatpush2.bf16.msra.mxu0 0
        %1517 = vmatprep.subr.bf16.mxu0 0
        %1518 = vmatpush2.bf16.msra.mxu0 0
        %1519 = vmatprep.subr.bf16.mxu0 0
        %1520 = vmatpush2.bf16.msra.mxu0 0
        %1521 = vmatprep.subr.bf16.mxu0 0
        %1522 = vmatpush2.bf16.msra.mxu0 0
        %1523 = vmatprep.subr.bf16.mxu0 0
        %1524 = vmatpush2.bf16.msra.mxu0 0
        %1525 = vmatprep.subr.bf16.mxu0 0
        %1526 = vmatpush2.bf16.msra.mxu0 0
        %1527 = vmatprep.subr.bf16.mxu0 0
        %1528 = vmatpush2.bf16.msra.mxu0 0
        %1529 = vmatprep.subr.bf16.mxu0 0
        %1530 = vmatpush2.bf16.msra.mxu0 0
        %1531 = vmatprep.mubr.bf16.mxu0 0
        %1532 = vmatmul.mubr.bf16.gmra.mxu0 %v1493
        %v1533 = vpop.f32.mrf.mxu0
        %v1534 = vadd.f32 0.0, %v1533
        %v1535 = vpop.f32.mrf.mxu0
        %v1536 = vpop.f32.mrf.mxu0
        %v1537 = vpop.f32.mrf.mxu0
        %1538 = vdwg.mxu0
        %v1540 = vsel %vm1447, %v1489, 0
        %v1543 = vsel %vm1495, %v1259, 0
        %1545 = vmatprep.subr.bf16.mxu0 0
        %1546 = vmatpush1.bf16.msra.mxu0 0
        %1547 = vmatprep.subr.bf16.mxu0 0
        %1548 = vmatpush1.bf16.msra.mxu0 0
        %1549 = vmatprep.subr.bf16.mxu0 0
        %1550 = vmatpush1.bf16.msra.mxu0 0
        %1551 = vmatprep.subr.bf16.mxu0 0
        %1552 = vmatpush1.bf16.msra.mxu0 0
        %1553 = vmatprep.subr.bf16.mxu0 0
        %1554 = vmatpush1.bf16.msra.mxu0 0
        %1555 = vmatprep.subr.bf16.mxu0 0
        %1556 = vmatpush1.bf16.msra.mxu0 0
        %1557 = vmatprep.subr.bf16.mxu0 0
        %1558 = vmatpush1.bf16.msra.mxu0 0
        %1559 = vmatprep.subr.bf16.mxu0 0
        %1560 = vmatpush1.bf16.msra.mxu0 %v1543
        %1561 = vmatprep.subr.bf16.mxu0 0
        %1562 = vmatpush2.bf16.msra.mxu0 0
        %1563 = vmatprep.subr.bf16.mxu0 0
        %1564 = vmatpush2.bf16.msra.mxu0 0
        %1565 = vmatprep.subr.bf16.mxu0 0
        %1566 = vmatpush2.bf16.msra.mxu0 0
        %1567 = vmatprep.subr.bf16.mxu0 0
        %1568 = vmatpush2.bf16.msra.mxu0 0
        %1569 = vmatprep.subr.bf16.mxu0 0
        %1570 = vmatpush2.bf16.msra.mxu0 0
        %1571 = vmatprep.subr.bf16.mxu0 0
        %1572 = vmatpush2.bf16.msra.mxu0 0
        %1573 = vmatprep.subr.bf16.mxu0 0
        %1574 = vmatpush2.bf16.msra.mxu0 0
        %1575 = vmatprep.subr.bf16.mxu0 0
        %1576 = vmatpush2.bf16.msra.mxu0 0
        %1577 = vmatprep.mubr.bf16.mxu0 0
        %1578 = vmatmul.mubr.bf16.gmra.mxu0 %v1540
        %v1579 = vpop.f32.mrf.mxu0
        %v1580 = vadd.f32 0.0, %v1579
        %v1581 = vpop.f32.mrf.mxu0
        %v1582 = vpop.f32.mrf.mxu0
        %v1583 = vpop.f32.mrf.mxu0
        %1584 = vdwg.mxu0
        %v1586 = vsel %vm1447, %v1490, 0
        %v1589 = vsel %vm1495, %v1260, 0
        %1591 = vmatprep.subr.bf16.mxu0 0
        %1592 = vmatpush1.bf16.msra.mxu0 0
        %1593 = vmatprep.subr.bf16.mxu0 0
        %1594 = vmatpush1.bf16.msra.mxu0 0
        %1595 = vmatprep.subr.bf16.mxu0 0
        %1596 = vmatpush1.bf16.msra.mxu0 0
        %1597 = vmatprep.subr.bf16.mxu0 0
        %1598 = vmatpush1.bf16.msra.mxu0 0
        %1599 = vmatprep.subr.bf16.mxu0 0
        %1600 = vmatpush1.bf16.msra.mxu0 0
        %1601 = vmatprep.subr.bf16.mxu0 0
        %1602 = vmatpush1.bf16.msra.mxu0 0
        %1603 = vmatprep.subr.bf16.mxu0 0
        %1604 = vmatpush1.bf16.msra.mxu0 0
        %1605 = vmatprep.subr.bf16.mxu0 0
        %1606 = vmatpush1.bf16.msra.mxu0 %v1589
        %1607 = vmatprep.subr.bf16.mxu0 0
        %1608 = vmatpush2.bf16.msra.mxu0 0
        %1609 = vmatprep.subr.bf16.mxu0 0
        %1610 = vmatpush2.bf16.msra.mxu0 0
        %1611 = vmatprep.subr.bf16.mxu0 0
        %1612 = vmatpush2.bf16.msra.mxu0 0
        %1613 = vmatprep.subr.bf16.mxu0 0
        %1614 = vmatpush2.bf16.msra.mxu0 0
        %1615 = vmatprep.subr.bf16.mxu0 0
        %1616 = vmatpush2.bf16.msra.mxu0 0
        %1617 = vmatprep.subr.bf16.mxu0 0
        %1618 = vmatpush2.bf16.msra.mxu0 0
        %1619 = vmatprep.subr.bf16.mxu0 0
        %1620 = vmatpush2.bf16.msra.mxu0 0
        %1621 = vmatprep.subr.bf16.mxu0 0
        %1622 = vmatpush2.bf16.msra.mxu0 0
        %1623 = vmatprep.mubr.bf16.mxu0 0
        %1624 = vmatmul.mubr.bf16.gmra.mxu0 %v1586
        %v1625 = vpop.f32.mrf.mxu0
        %v1626 = vadd.f32 0.0, %v1625
        %v1627 = vpop.f32.mrf.mxu0
        %v1628 = vpop.f32.mrf.mxu0
        %v1629 = vpop.f32.mrf.mxu0
        %1630 = vdwg.mxu0
        %v1632 = vsel %vm1447, %v1491, 0
        %v1635 = vsel %vm1495, %v1261, 0
        %1637 = vmatprep.subr.bf16.mxu0 0
        %1638 = vmatpush1.bf16.msra.mxu0 0
        %1639 = vmatprep.subr.bf16.mxu0 0
        %1640 = vmatpush1.bf16.msra.mxu0 0
        %1641 = vmatprep.subr.bf16.mxu0 0
        %1642 = vmatpush1.bf16.msra.mxu0 0
        %1643 = vmatprep.subr.bf16.mxu0 0
        %1644 = vmatpush1.bf16.msra.mxu0 0
        %1645 = vmatprep.subr.bf16.mxu0 0
        %1646 = vmatpush1.bf16.msra.mxu0 0
        %1647 = vmatprep.subr.bf16.mxu0 0
        %1648 = vmatpush1.bf16.msra.mxu0 0
        %1649 = vmatprep.subr.bf16.mxu0 0
        %1650 = vmatpush1.bf16.msra.mxu0 0
        %1651 = vmatprep.subr.bf16.mxu0 0
        %1652 = vmatpush1.bf16.msra.mxu0 %v1635
        %1653 = vmatprep.subr.bf16.mxu0 0
        %1654 = vmatpush2.bf16.msra.mxu0 0
        %1655 = vmatprep.subr.bf16.mxu0 0
        %1656 = vmatpush2.bf16.msra.mxu0 0
        %1657 = vmatprep.subr.bf16.mxu0 0
        %1658 = vmatpush2.bf16.msra.mxu0 0
        %1659 = vmatprep.subr.bf16.mxu0 0
        %1660 = vmatpush2.bf16.msra.mxu0 0
        %1661 = vmatprep.subr.bf16.mxu0 0
        %1662 = vmatpush2.bf16.msra.mxu0 0
        %1663 = vmatprep.subr.bf16.mxu0 0
        %1664 = vmatpush2.bf16.msra.mxu0 0
        %1665 = vmatprep.subr.bf16.mxu0 0
        %1666 = vmatpush2.bf16.msra.mxu0 0
        %1667 = vmatprep.subr.bf16.mxu0 0
        %1668 = vmatpush2.bf16.msra.mxu0 0
        %1669 = vmatprep.mubr.bf16.mxu0 0
        %1670 = vmatmul.mubr.bf16.gmra.mxu0 %v1632
        %v1671 = vpop.f32.mrf.mxu0
        %v1672 = vadd.f32 0.0, %v1671
        %v1673 = vpop.f32.mrf.mxu0
        %v1674 = vpop.f32.mrf.mxu0
        %v1675 = vpop.f32.mrf.mxu0
        %1676 = vdwg.mxu0
        %v1677 = vmul.f32 %v1534, %v1484
        %v1678 = vmul.f32 %v1580, %v1485
        %v1679 = vmul.f32 %v1626, %v1486
        %v1680 = vmul.f32 %v1672, %v1487
        %v1681 = vcombine.low %v1677, %v1679
        %v1682 = vcombine.high %v1677, %v1679
        %v1684 = vunpack.c.l.s4 1983009808
        %v1685 = vunpack.c.0.s8 %v1684
        %v1686 = vlaneseq
        %v1687 = vshrl.u32 %v1686, 7
        %v1688 = vsub.s32 %v1685, %v1687
        %v1689 = vrot.slane %v1681, %v1688
        %v1691 = vunpack.c.l.s4 1983009808
        %v1692 = vunpack.c.0.s8 %v1691
        %v1693 = vlaneseq
        %v1694 = vshrl.u32 %v1693, 7
        %v1695 = vsub.s32 %v1692, %v1694
        %v1696 = vrot.slane %v1682, %v1695
        %v1697 = vcombine.low %v1678, %v1680
        %v1698 = vcombine.high %v1678, %v1680
        %v1700 = vunpack.c.l.s4 1983009808
        %v1701 = vunpack.c.0.s8 %v1700
        %v1702 = vlaneseq
        %v1703 = vshrl.u32 %v1702, 7
        %v1704 = vsub.s32 %v1701, %v1703
        %v1705 = vrot.slane %v1697, %v1704
        %v1707 = vunpack.c.l.s4 1983009808
        %v1708 = vunpack.c.0.s8 %v1707
        %v1709 = vlaneseq
        %v1710 = vshrl.u32 %v1709, 7
        %v1711 = vsub.s32 %v1708, %v1710
        %v1712 = vrot.slane %v1698, %v1711
        %v1713 = vcombine.low %v1689, %v1705
        %v1714 = vcombine.high %v1689, %v1705
        %v1716 = vunpack.c.l.s4 1934713408
        %v1717 = vunpack.c.0.s8 %v1716
        %v1718 = vlaneseq
        %v1719 = vshrl.u32 %v1718, 7
        %v1720 = vsub.s32 %v1717, %v1719
        %v1721 = vrot.slane %v1713, %v1720
        %v1723 = vunpack.c.l.s4 1934713408
        %v1724 = vunpack.c.0.s8 %v1723
        %v1725 = vlaneseq
        %v1726 = vshrl.u32 %v1725, 7
        %v1727 = vsub.s32 %v1724, %v1726
        %v1728 = vrot.slane %v1714, %v1727
        %v1729 = vcombine.low %v1696, %v1712
        %v1730 = vcombine.high %v1696, %v1712
        %v1732 = vunpack.c.l.s4 1934713408
        %v1733 = vunpack.c.0.s8 %v1732
        %v1734 = vlaneseq
        %v1735 = vshrl.u32 %v1734, 7
        %v1736 = vsub.s32 %v1733, %v1735
        %v1737 = vrot.slane %v1729, %v1736
        %v1739 = vunpack.c.l.s4 1934713408
        %v1740 = vunpack.c.0.s8 %v1739
        %v1741 = vlaneseq
        %v1742 = vshrl.u32 %v1741, 7
        %v1743 = vsub.s32 %v1740, %v1742
        %v1744 = vrot.slane %v1730, %v1743
        %v1745 = vcombine.high %v1721, 0.0
        %v1746 = vcombine.high %v1728, 0.0
        %v1747 = vcombine.high %v1737, 0.0
        %v1748 = vcombine.high %v1744, 0.0
        %v1749 = vcombine.low %v1721, %v1728
        %v1751 = vunpack.c.l.s4 1983009808
        %v1752 = vunpack.c.0.s8 %v1751
        %v1753 = vlaneseq
        %v1754 = vshrl.u32 %v1753, 7
        %v1755 = vsub.s32 %v1752, %v1754
        %v1756 = vrot.slane %v1749, %v1755
        %v1757 = vcombine.low %v1745, %v1746
        %v1759 = vunpack.c.l.s4 1983009808
        %v1760 = vunpack.c.0.s8 %v1759
        %v1761 = vlaneseq
        %v1762 = vshrl.u32 %v1761, 7
        %v1763 = vsub.s32 %v1760, %v1762
        %v1764 = vrot.slane %v1757, %v1763
        %v1765 = vcombine.low %v1737, %v1744
        %v1767 = vunpack.c.l.s4 1983009808
        %v1768 = vunpack.c.0.s8 %v1767
        %v1769 = vlaneseq
        %v1770 = vshrl.u32 %v1769, 7
        %v1771 = vsub.s32 %v1768, %v1770
        %v1772 = vrot.slane %v1765, %v1771
        %v1773 = vcombine.low %v1747, %v1748
        %v1775 = vunpack.c.l.s4 1983009808
        %v1776 = vunpack.c.0.s8 %v1775
        %v1777 = vlaneseq
        %v1778 = vshrl.u32 %v1777, 7
        %v1779 = vsub.s32 %v1776, %v1778
        %v1780 = vrot.slane %v1773, %v1779
        %v1781 = vcombine.low %v1756, %v1764
        %v1782 = vcombine.high %v1756, %v1764
        %v1784 = vunpack.c.l.s4 1934713408
        %v1785 = vunpack.c.0.s8 %v1784
        %v1786 = vlaneseq
        %v1787 = vshrl.u32 %v1786, 7
        %v1788 = vsub.s32 %v1785, %v1787
        %v1789 = vrot.slane %v1781, %v1788
        %v1791 = vunpack.c.l.s4 1934713408
        %v1792 = vunpack.c.0.s8 %v1791
        %v1793 = vlaneseq
        %v1794 = vshrl.u32 %v1793, 7
        %v1795 = vsub.s32 %v1792, %v1794
        %v1796 = vrot.slane %v1782, %v1795
        %v1797 = vcombine.low %v1772, %v1780
        %v1798 = vcombine.high %v1772, %v1780
        %v1800 = vunpack.c.l.s4 1934713408
        %v1801 = vunpack.c.0.s8 %v1800
        %v1802 = vlaneseq
        %v1803 = vshrl.u32 %v1802, 7
        %v1804 = vsub.s32 %v1801, %v1803
        %v1805 = vrot.slane %v1797, %v1804
        %v1807 = vunpack.c.l.s4 1934713408
        %v1808 = vunpack.c.0.s8 %v1807
        %v1809 = vlaneseq
        %v1810 = vshrl.u32 %v1809, 7
        %v1811 = vsub.s32 %v1808, %v1810
        %v1812 = vrot.slane %v1798, %v1811
        %v1813 = vcombine.low %v1789, %v1805
        %v1814 = vcombine.high %v1789, %v1805
        %v1815 = vcombine.low %v1796, %v1812
        %v1816 = vcombine.high %v1796, %v1812
        %1818 = vrot.lane.b32.xlu0 %v1814, 32
        %v1819 = vpop.permute.xlu0 %1818
        %1822 = vrot.lane.b32.xlu0 %v1815, 64
        %v1823 = vpop.permute.xlu0 %1822
        %1826 = vrot.lane.b32.xlu0 %v1816, 96
        %v1827 = vpop.permute.xlu0 %1826
        %v1829 = vsel %vm1262, %v1813, %v1819
        %vm1830 = vcmask 523264
        %v1831 = vsel %vm1830, %v1829, %v1823
        %vm1832 = vcmask 785408
        %v1833 = vsel %vm1832, %v1831, %v1827
        %v1834 = vpack.c.bf16 %v1833, %v1833
        %v1835 = vld [vmem:[#allocation13] sm:$0xf]
        %v1836 = vld [vmem:[#allocation13 + $0x4] sm:$0xf]
        %v1837 = vld [vmem:[#allocation13 + $0x8] sm:$0xf]
        %v1838 = vld [vmem:[#allocation13 + $0xc] sm:$0xf]
        %v1839 = vld [vmem:[#allocation13 + $0x10] sm:$0xf]
        %v1840 = vld [vmem:[#allocation13 + $0x14] sm:$0xf]
        %v1841 = vld [vmem:[#allocation13 + $0x18] sm:$0xf]
        %v1842 = vld [vmem:[#allocation13 + $0x1c] sm:$0xf]
        %v1843 = vld [vmem:[#allocation13 + $0x20] sm:$0xf]
        %v1844 = vld [vmem:[#allocation13 + $0x24] sm:$0xf]
        %v1845 = vld [vmem:[#allocation13 + $0x28] sm:$0xf]
        %v1846 = vld [vmem:[#allocation13 + $0x2c] sm:$0xf]
        %v1847 = vld [vmem:[#allocation13 + $0x30] sm:$0xf]
        %v1848 = vld [vmem:[#allocation13 + $0x34] sm:$0xf]
        %v1849 = vld [vmem:[#allocation13 + $0x38] sm:$0xf]
        %v1850 = vld [vmem:[#allocation13 + $0x3c] sm:$0xf]
        %v1867 = vunpack.c.l.b16 %v1835
        %v1868 = vunpack.c.l.b16 %v1836
        %v1869 = vunpack.c.l.b16 %v1837
        %v1870 = vunpack.c.l.b16 %v1838
        %v1871 = vunpack.c.l.b16 %v1839
        %v1872 = vunpack.c.l.b16 %v1840
        %v1873 = vunpack.c.l.b16 %v1841
        %v1874 = vunpack.c.l.b16 %v1842
        %v1875 = vunpack.c.l.b16 %v1843
        %v1876 = vunpack.c.l.b16 %v1844
        %v1877 = vunpack.c.l.b16 %v1845
        %v1878 = vunpack.c.l.b16 %v1846
        %v1879 = vunpack.c.l.b16 %v1847
        %v1880 = vunpack.c.l.b16 %v1848
        %v1881 = vunpack.c.l.b16 %v1849
        %v1882 = vunpack.c.l.b16 %v1850
        %v1883 = vpack.c.b16 %v1868, %v1867
        %v1884 = vpack.c.b16 %v1870, %v1869
        %v1885 = vpack.c.b16 %v1872, %v1871
        %v1886 = vpack.c.b16 %v1874, %v1873
        %v1887 = vpack.c.b16 %v1876, %v1875
        %v1888 = vpack.c.b16 %v1878, %v1877
        %v1889 = vpack.c.b16 %v1880, %v1879
        %v1890 = vpack.c.b16 %v1882, %v1881
        %1899 = vmatprep.subr.bf16.mxu0 0
        %1900 = vmatpush1.bf16.msra.mxu0 %v1890
        %1901 = vmatprep.subr.bf16.mxu0 0
        %1902 = vmatpush1.bf16.msra.mxu0 %v1889
        %1903 = vmatprep.subr.bf16.mxu0 0
        %1904 = vmatpush1.bf16.msra.mxu0 %v1888
        %1905 = vmatprep.subr.bf16.mxu0 0
        %1906 = vmatpush1.bf16.msra.mxu0 %v1887
        %1907 = vmatprep.subr.bf16.mxu0 0
        %1908 = vmatpush1.bf16.msra.mxu0 %v1886
        %1909 = vmatprep.subr.bf16.mxu0 0
        %1910 = vmatpush1.bf16.msra.mxu0 %v1885
        %1911 = vmatprep.subr.bf16.mxu0 0
        %1912 = vmatpush1.bf16.msra.mxu0 %v1884
        %1913 = vmatprep.subr.bf16.mxu0 0
        %1914 = vmatpush1.bf16.msra.mxu0 %v1883
        %1915 = vmatprep.subr.bf16.mxu0 0
        %1916 = vmatpush2.bf16.msra.mxu0 0
        %1917 = vmatprep.subr.bf16.mxu0 0
        %1918 = vmatpush2.bf16.msra.mxu0 0
        %1919 = vmatprep.subr.bf16.mxu0 0
        %1920 = vmatpush2.bf16.msra.mxu0 0
        %1921 = vmatprep.subr.bf16.mxu0 0
        %1922 = vmatpush2.bf16.msra.mxu0 0
        %1923 = vmatprep.subr.bf16.mxu0 0
        %1924 = vmatpush2.bf16.msra.mxu0 0
        %1925 = vmatprep.subr.bf16.mxu0 0
        %1926 = vmatpush2.bf16.msra.mxu0 0
        %1927 = vmatprep.subr.bf16.mxu0 0
        %1928 = vmatpush2.bf16.msra.mxu0 0
        %1929 = vmatprep.subr.bf16.mxu0 0
        %1930 = vmatpush2.bf16.msra.mxu0 0
        %1931 = vmatprep.mubr.bf16.mxu0 0
        %1932 = vmatmul.mubr.bf16.gmra.mxu0 %v1834
        %v1933 = vpop.f32.mrf.mxu0
        %v1934 = vadd.f32 %v495, %v1933
        %v1935 = vpop.f32.mrf.mxu0
        %v1936 = vpop.f32.mrf.mxu0
        %v1937 = vpop.f32.mrf.mxu0
        %1938 = vdwg.mxu0
        %v1939 = vld [vmem:[%s7] sm:$0x1]
        %v1940 = vld [vmem:[%s8] sm:$0x1]
        %1941 = vadd.xlane.f32.xlu0 %v1934
        %v1942 = vpop.xlane.xlu0 %1941
        %v1943 = vrcp.pop 128.0
        %v1944 = vmul.f32 %v1942, %v1943
        %v1945 = vsub.f32 %v1934, %v1944
        %v1946 = vmul.f32 %v1945, %v1945
        %1947 = vadd.xlane.f32.xlu0 %v1946
        %v1948 = vpop.xlane.xlu0 %1947
        %v1949 = vmul.f32 %v1948, %v1943
        %v1950 = vadd.f32 %v1949, 1e-06
        %v1951 = vrsqrt.pop %v1950
        %v1952 = vmul.f32 %v1945, %v1951
        %v1954 = vlaneseq
        %v1955 = vshrl.u32 %v1954, 7
        %v1956 = vsub.s32 0, %v1955
        %v1957 = vrot.slane %v1939, %v1956
        %v1959 = vmul.f32 %v1952, %v1957
        %v1961 = vlaneseq
        %v1962 = vshrl.u32 %v1961, 7
        %v1963 = vsub.s32 0, %v1962
        %v1964 = vrot.slane %v1940, %v1963
        %v1966 = vadd.f32 %v1959, %v1964
        %1967 = vst [vmem:[%s493] sm:$0xff] %v1966
        %s1968 = sand.u32 %s259, 1
        %s1969 = scalar_lea.sflag [#allocation4], %s1968
        %s1970 = sand.u32 %s259, 1
        %s1971 = smul.addr %s1970, 8
        %s1972 = scalar_lea.vmem [#allocation14], %s1971
        // Predicated region
        $region85: #{tpu_custom_call.1} parent=55 // pred_check
          %p1973 = pneg %p269
        $region86: #{tpu_custom_call.1} parent=55 // pred_check_branch
          %1975 = sbr.rel (%p1973) target = $region88
        $region87: #{tpu_custom_call.1} parent=55 // pred_region
          %s1977 = ssub.s32 128, 128
          %1978 = vsyncadd %s1969, %s1977
          %s1979 = sadd.s32 %s36, %s35
          %s1980 = smul.addr %s1979, 128
          %s1981 = scalar_lea.hbm %s9, %s1980
          %s1983 = sshll.u32 %s1972, 4
          %s1984 = int_to_ptr.vmem [resolvable:$true] %s1983
          %1986 = dma.vmem_to_hbm [thread:$0]  %s1984, 128, %s1981, %s1969
        $region88: #{tpu_custom_call.1} parent=55 // pred_fallthru
          _
      $region56: #{tpu_custom_call.1} parent=5 // pred_fallthru
        _
      %p1987 = scmp.le.s32.totalorder 2, %s26
      // Predicated region
      $region89: #{tpu_custom_call.1} parent=5 // pred_check
        %p1988 = pneg %p1987
      $region90: #{tpu_custom_call.1} parent=5 // pred_check_branch
        %1990 = sbr.rel (%p1988) target = $region92
      $region91: #{tpu_custom_call.1} parent=5 // pred_region
        %s1991 = ssub.s32 %s26, 2
        // Predicated region
        $region93: #{tpu_custom_call.1} parent=91 // pred_check
          %p1992 = pneg %p275
        $region94: #{tpu_custom_call.1} parent=91 // pred_check_branch
          %1994 = sbr.rel (%p1992) target = $region96
        $region95: #{tpu_custom_call.1} parent=91 // pred_region
          %s1995 = sand.u32 %s260, 1
          %s1996 = scalar_lea.sflag [#allocation4], %s1995
          %s1997 = sand.u32 %s260, 1
          %s1998 = smul.addr %s1997, 8
          %s1999 = scalar_lea.vmem [#allocation14], %s1998
          %2000 = dma.done %s1996, 128
        $region96: #{tpu_custom_call.1} parent=91 // pred_fallthru
          _
      $region92: #{tpu_custom_call.1} parent=5 // pred_fallthru
        _
    $region6: #{tpu_custom_call.1} parent=1 // loop_footer
      %s30 = sadd.s32 1, %s26
    $region7: #{tpu_custom_call.1} parent=1 // loop_footer_branch
      %25 = sbr.rel target = $region3
    $region8: #{tpu_custom_call.1} parent=1 // loop_exit
      _
    %2001 = vsyncpa [#allocation3], 1
    %s2002 = scalar_lea.sflag [#allocation3], 1
    %2003 = vsyncpa %s2002, 1
    %2004 = vsyncpa [#allocation6], 1
    %s2005 = scalar_lea.sflag [#allocation6], 1
    %2006 = vsyncpa %s2005, 1
    %2007 = vsyncpa [#allocation9], 1
    %2008 = vsyncpa [#allocation12], 1
    %2009 = vsyncpa [#allocation4], 1
    %s2010 = scalar_lea.sflag [#allocation4], 1
    %2011 = vsyncpa %s2010, 1

</llo_original>
